<compile_context>
chip_gen: v7x
topology: tpu7x:2x2x1
jax: 0.10.0
libtpu: 0.0.40
codegen_flags: <defaults>
</compile_context>

<pallas_src>
import jax
import jax.numpy as jnp
import numpy as np
from jax.experimental import pallas as pl
from jax.experimental.pallas import tpu as pltpu


# ----------------------------- Pallas kernel ------------------------------ #
def _pinn_mlp_kernel(r_ref, th_ref, ph_ref, t_ref, *wb_and_out):
    """Args: 4 input rows, then (W0, b0, W1, b1, ..., Wk, bk, out_ref).

    r/th/ph/t refs: (1, tile_n)   one feature row each, batch on lanes
    W_i:            (out_i, in_i) torch orientation
    b_i:            (out_i, 1)
    out_ref:        (out_dim, tile_n)
    """
    out_ref = wb_and_out[-1]
    wb = wb_and_out[:-1]
    n_layers = len(wb) // 2

    r = r_ref[...]                                  # (1, T) f32
    th = th_ref[...]
    ph = ph_ref[...]
    t = t_ref[...]

    # Layer 0: K = 4 contraction done as 4 broadcasted multiply-adds on the
    # VPU (outer-product form).  Avoids a half-empty K=4 MXU matmul and its
    # MRF drain bubble; VALU slots have plenty of slack here.
    w0 = wb[0][...]                                 # (h0, 4)
    b0 = wb[1][...]                                 # (h0, 1)
    x = (w0[:, 0:1] * r + w0[:, 1:2] * th
         + w0[:, 2:3] * ph + w0[:, 3:4] * t + b0)   # (h0, T)
    if n_layers > 1:                                # Tanh on all but last Linear
        x = jnp.tanh(x)

    # Hidden / output layers on the MXU with f32 accumulation.
    for li in range(1, n_layers):
        w = wb[2 * li][...]                         # (out, in)
        b = wb[2 * li + 1][...]                     # (out, 1)
        x = jnp.dot(w, x, preferred_element_type=jnp.float32) + b
        if li < n_layers - 1:
            x = jnp.tanh(x)

    out_ref[...] = x.astype(out_ref.dtype)


# ------------------------------ JAX wrapper -------------------------------- #
def pinn3d_spherical_forward(r, theta, phi, t, params, *, tile_n=8192):
    """params: list of (W, b) with W shape (out, in), b shape (out, 1)."""
    N = r.shape[0]
    in_dim = 4
    out_dim = params[-1][0].shape[0]
    f32 = jnp.float32

    # Four separate (1, N) rows: the (N,1)->(1,N) reshape is free (same linear
    # data); explicit f32 cast guards against float64 NumPy inputs.
    rows = [jnp.reshape(jnp.asarray(a, f32), (1, N)) for a in (r, theta, phi, t)]

    # Lane tile: a multiple of 128, as large as tile_n, but never larger than
    # the 128-rounded batch so small problems run as a single grid step.
    n_min = pl.cdiv(N, 128) * 128
    tile = max(128, (min(tile_n, n_min) // 128) * 128)
    n_total = pl.cdiv(N, tile) * tile
    if n_total != N:
        # Rare path (N not a multiple of tile).  Padded lanes flow through the
        # net independently -- batch sits on lanes, all contractions are over
        # features -- and are sliced off below.
        rows = [jnp.pad(x, ((0, 0), (0, n_total - N))) for x in rows]
    grid = (n_total // tile,)

    row_spec = pl.BlockSpec((1, tile), lambda i: (0, i))
    in_specs = [row_spec, row_spec, row_spec, row_spec]
    flat_params = []
    for (W, b) in params:
        flat_params += [jnp.asarray(W, f32), jnp.asarray(b, f32)]
        # Tiny, grid-invariant blocks: constant index map -> fetched once, no
        # re-fetch between grid steps, default double-buffering is plenty.
        in_specs.append(pl.BlockSpec(W.shape, lambda i: (0, 0)))
        in_specs.append(pl.BlockSpec(b.shape, lambda i: (0, 0)))

    flops = 2 * n_total * sum(w.shape[0] * w.shape[1] for w, _ in params)
    transcendentals = n_total * sum(w.shape[0] for w, _ in params[:-1])
    bytes_accessed = 4 * (
        n_total * (in_dim + out_dim)
        + sum(w.size + b.size for w, b in params))

    out = pl.pallas_call(
        _pinn_mlp_kernel,
        out_shape=jax.ShapeDtypeStruct((out_dim, n_total), f32),
        grid=grid,
        in_specs=in_specs,
        out_specs=pl.BlockSpec((out_dim, tile), lambda i: (0, i)),
        compiler_params=pltpu.CompilerParams(
            dimension_semantics=("parallel",)),
        cost_estimate=pl.CostEstimate(
            flops=flops,
            transcendentals=transcendentals,
            bytes_accessed=bytes_accessed),
    )(*rows, *flat_params)

    u = out[0, :N].reshape(N, 1)
    v = out[1, :N].reshape(N, 1)
    return u, v


# ------------------------- deterministic init ------------------------------ #
def init_params(layers, key):
    """Torch-style params: W (out, in) Xavier-normal (tanh gain 5/3), b (out,1)=0."""
    gain = 5.0 / 3.0
    params = []
    for i in range(len(layers) - 1):
        fan_in, fan_out = layers[i], layers[i + 1]
        key, sub = jax.random.split(key)
        std = gain * np.sqrt(2.0 / (fan_in + fan_out))
        W = jax.random.normal(sub, (fan_out, fan_in), jnp.float32) * std
        b = jnp.zeros((fan_out, 1), jnp.float32)
        params.append((W, b))
    return params


# ----------------------------- reference (JAX) ----------------------------- #
def _reference(r, theta, phi, t, params):
    x = jnp.concatenate([r, theta, phi, t], axis=1)
    for i, (W, b) in enumerate(params):
        x = x @ W.T + b.T
        if i < len(params) - 1:
            x = jnp.tanh(x)
    return x[:, 0:1], x[:, 1:2]


def _make_inputs(key, N):
    k_r, k_th, k_ph, k_t = jax.random.split(key, 4)
    r = jax.random.uniform(k_r, (N, 1), jnp.float32)
    theta = jax.random.uniform(k_th, (N, 1), jnp.float32) * np.pi
    phi = jax.random.uniform(k_ph, (N, 1), jnp.float32) * 2.0 * np.pi
    t = jax.random.uniform(k_t, (N, 1), jnp.float32)
    return r, theta, phi, t


if __name__ == "__main__":
    key = jax.random.PRNGKey(0)
    k_in, k_in2, k_p = jax.random.split(key, 3)

    # layers = [4 inputs (r, theta, phi, t), hidden 32, hidden 32, 2 outputs (u, v)]
    layers = [4, 32, 32, 2]
    params = init_params(layers, k_p)

    # Case 1: N a multiple of 128 -> no pad, single grid step (tile clamps to N).
    N1 = 2048
    r, theta, phi, t = _make_inputs(k_in, N1)
    u, v = pinn3d_spherical_forward(r, theta, phi, t, params)
    u = jax.block_until_ready(u)
    v = jax.block_until_ready(v)
    u_ref, v_ref = _reference(r, theta, phi, t, params)
    np.testing.assert_allclose(np.asarray(u), np.asarray(u_ref), rtol=1e-5, atol=1e-5)
    np.testing.assert_allclose(np.asarray(v), np.asarray(v_ref), rtol=1e-5, atol=1e-5)
    assert u.shape == (N1, 1) and v.shape == (N1, 1)

    # Case 2: ragged N -> exercises the (rare) pad path; padded lanes discarded.
    N2 = 300
    r2, theta2, phi2, t2 = _make_inputs(k_in2, N2)
    u2, v2 = pinn3d_spherical_forward(r2, theta2, phi2, t2, params)
    u2 = jax.block_until_ready(u2)
    v2 = jax.block_until_ready(v2)
    u2_ref, v2_ref = _reference(r2, theta2, phi2, t2, params)
    np.testing.assert_allclose(np.asarray(u2), np.asarray(u2_ref), rtol=1e-5, atol=1e-5)
    np.testing.assert_allclose(np.asarray(v2), np.asarray(v2_ref), rtol=1e-5, atol=1e-5)
    assert u2.shape == (N2, 1) and v2.shape == (N2, 1)

    print("KERNEL_OK")
</pallas_src>

<mosaic_0001>
module attributes {stable_mosaic.version = 11 : i64} {
  func.func @_pinn_mlp_kernel(%arg0: i32, %arg1: memref<1x2048xf32, #tpu.memory_space<vmem>>, %arg2: memref<1x2048xf32, #tpu.memory_space<vmem>>, %arg3: memref<1x2048xf32, #tpu.memory_space<vmem>>, %arg4: memref<1x2048xf32, #tpu.memory_space<vmem>>, %arg5: memref<32x4xf32, #tpu.memory_space<vmem>>, %arg6: memref<32x1xf32, #tpu.memory_space<vmem>>, %arg7: memref<32x32xf32, #tpu.memory_space<vmem>>, %arg8: memref<32x1xf32, #tpu.memory_space<vmem>>, %arg9: memref<2x32xf32, #tpu.memory_space<vmem>>, %arg10: memref<2x1xf32, #tpu.memory_space<vmem>>, %arg11: memref<2x2048xf32, #tpu.memory_space<vmem>>) attributes {dimension_semantics = [#tpu.dimension_semantics<parallel>], iteration_bounds = array<i64: 1>, scalar_prefetch = 0 : i64, scratch_operands = 0 : i64, tpu.core_type = #tpu.core_type<tc>, window_params = [{transform_indices = @transform_0, window_bounds = array<i64: 1, 2048>}, {transform_indices = @transform_1, window_bounds = array<i64: 1, 2048>}, {transform_indices = @transform_2, window_bounds = array<i64: 1, 2048>}, {transform_indices = @transform_3, window_bounds = array<i64: 1, 2048>}, {pipeline_mode = #tpu.pipeline_mode<synchronous>, transform_indices = @transform_4, window_bounds = array<i64: 32, 4>}, {pipeline_mode = #tpu.pipeline_mode<synchronous>, transform_indices = @transform_5, window_bounds = array<i64: 32, 1>}, {pipeline_mode = #tpu.pipeline_mode<synchronous>, transform_indices = @transform_6, window_bounds = array<i64: 32, 32>}, {pipeline_mode = #tpu.pipeline_mode<synchronous>, transform_indices = @transform_7, window_bounds = array<i64: 32, 1>}, {pipeline_mode = #tpu.pipeline_mode<synchronous>, transform_indices = @transform_8, window_bounds = array<i64: 2, 32>}, {pipeline_mode = #tpu.pipeline_mode<synchronous>, transform_indices = @transform_9, window_bounds = array<i64: 2, 1>}, {transform_indices = @transform_10, window_bounds = array<i64: 2, 2048>}]} {
    %c0 = arith.constant 0 : index
    %c0_0 = arith.constant 0 : index
    %0 = vector.load %arg1[%c0, %c0_0] : memref<1x2048xf32, #tpu.memory_space<vmem>>, vector<1x2048xf32>
    %c0_1 = arith.constant 0 : index
    %c0_2 = arith.constant 0 : index
    %1 = vector.load %arg2[%c0_1, %c0_2] : memref<1x2048xf32, #tpu.memory_space<vmem>>, vector<1x2048xf32>
    %c0_3 = arith.constant 0 : index
    %c0_4 = arith.constant 0 : index
    %2 = vector.load %arg3[%c0_3, %c0_4] : memref<1x2048xf32, #tpu.memory_space<vmem>>, vector<1x2048xf32>
    %c0_5 = arith.constant 0 : index
    %c0_6 = arith.constant 0 : index
    %3 = vector.load %arg4[%c0_5, %c0_6] : memref<1x2048xf32, #tpu.memory_space<vmem>>, vector<1x2048xf32>
    %c0_7 = arith.constant 0 : index
    %c0_8 = arith.constant 0 : index
    %4 = vector.load %arg5[%c0_7, %c0_8] : memref<32x4xf32, #tpu.memory_space<vmem>>, vector<32x4xf32>
    %c0_9 = arith.constant 0 : index
    %c0_10 = arith.constant 0 : index
    %5 = vector.load %arg6[%c0_9, %c0_10] : memref<32x1xf32, #tpu.memory_space<vmem>>, vector<32x1xf32>
    %6 = vector.extract_strided_slice %4 {offsets = [0, 0], sizes = [32, 1], strides = [1, 1]} : vector<32x4xf32> to vector<32x1xf32>
    %7 = vector.broadcast %6 : vector<32x1xf32> to vector<32x2048xf32>
    %8 = vector.broadcast %0 : vector<1x2048xf32> to vector<32x2048xf32>
    %9 = arith.mulf %7, %8 : vector<32x2048xf32>
    %10 = vector.extract_strided_slice %4 {offsets = [0, 1], sizes = [32, 1], strides = [1, 1]} : vector<32x4xf32> to vector<32x1xf32>
    %11 = vector.broadcast %10 : vector<32x1xf32> to vector<32x2048xf32>
    %12 = vector.broadcast %1 : vector<1x2048xf32> to vector<32x2048xf32>
    %13 = arith.mulf %11, %12 : vector<32x2048xf32>
    %14 = arith.addf %9, %13 : vector<32x2048xf32>
    %15 = vector.extract_strided_slice %4 {offsets = [0, 2], sizes = [32, 1], strides = [1, 1]} : vector<32x4xf32> to vector<32x1xf32>
    %16 = vector.broadcast %15 : vector<32x1xf32> to vector<32x2048xf32>
    %17 = vector.broadcast %2 : vector<1x2048xf32> to vector<32x2048xf32>
    %18 = arith.mulf %16, %17 : vector<32x2048xf32>
    %19 = arith.addf %14, %18 : vector<32x2048xf32>
    %20 = vector.extract_strided_slice %4 {offsets = [0, 3], sizes = [32, 1], strides = [1, 1]} : vector<32x4xf32> to vector<32x1xf32>
    %21 = vector.broadcast %20 : vector<32x1xf32> to vector<32x2048xf32>
    %22 = vector.broadcast %3 : vector<1x2048xf32> to vector<32x2048xf32>
    %23 = arith.mulf %21, %22 : vector<32x2048xf32>
    %24 = arith.addf %19, %23 : vector<32x2048xf32>
    %25 = vector.broadcast %5 : vector<32x1xf32> to vector<32x2048xf32>
    %26 = arith.addf %24, %25 : vector<32x2048xf32>
    %27 = math.tanh %26 : vector<32x2048xf32>
    %c0_11 = arith.constant 0 : index
    %c0_12 = arith.constant 0 : index
    %28 = vector.load %arg7[%c0_11, %c0_12] : memref<32x32xf32, #tpu.memory_space<vmem>>, vector<32x32xf32>
    %c0_13 = arith.constant 0 : index
    %c0_14 = arith.constant 0 : index
    %29 = vector.load %arg8[%c0_13, %c0_14] : memref<32x1xf32, #tpu.memory_space<vmem>>, vector<32x1xf32>
    %cst = arith.constant dense<0.000000e+00> : vector<32x2048xf32>
    %30 = tpu.matmul %28, %27, %cst {dimension_numbers = #tpu.dot_dimension_numbers<[1], [0], [0], [1], [0, 0, 1, 1], [], []>} : vector<32x32xf32>, vector<32x2048xf32>, vector<32x2048xf32> -> vector<32x2048xf32>
    %31 = vector.broadcast %29 : vector<32x1xf32> to vector<32x2048xf32>
    %32 = arith.addf %30, %31 : vector<32x2048xf32>
    %33 = math.tanh %32 : vector<32x2048xf32>
    %c0_15 = arith.constant 0 : index
    %c0_16 = arith.constant 0 : index
    %34 = vector.load %arg9[%c0_15, %c0_16] : memref<2x32xf32, #tpu.memory_space<vmem>>, vector<2x32xf32>
    %c0_17 = arith.constant 0 : index
    %c0_18 = arith.constant 0 : index
    %35 = vector.load %arg10[%c0_17, %c0_18] : memref<2x1xf32, #tpu.memory_space<vmem>>, vector<2x1xf32>
    %cst_19 = arith.constant dense<0.000000e+00> : vector<2x2048xf32>
    %36 = tpu.matmul %34, %33, %cst_19 {dimension_numbers = #tpu.dot_dimension_numbers<[1], [0], [0], [1], [0, 0, 1, 1], [], []>} : vector<2x32xf32>, vector<32x2048xf32>, vector<2x2048xf32> -> vector<2x2048xf32>
    %37 = vector.broadcast %35 : vector<2x1xf32> to vector<2x2048xf32>
    %38 = arith.addf %36, %37 : vector<2x2048xf32>
    %c0_20 = arith.constant 0 : index
    %c0_21 = arith.constant 0 : index
    %39 = vector.load %arg11[%c0_20, %c0_21] : memref<2x2048xf32, #tpu.memory_space<vmem>>, vector<2x2048xf32>
    tpu.vector_store %arg11[%c0_20, %c0_21], %38 {strides = array<i32>} : memref<2x2048xf32, #tpu.memory_space<vmem>>, vector<2x2048xf32>,
    return
  }
  func.func @transform_0(%arg0: i32) -> (i32, i32) {
    %c0_i32 = arith.constant 0 : i32
    %c0_i32_0 = arith.constant 0 : i32
    return %c0_i32, %arg0 : i32, i32
  }
  func.func @transform_1(%arg0: i32) -> (i32, i32) {
    %c0_i32 = arith.constant 0 : i32
    %c0_i32_0 = arith.constant 0 : i32
    return %c0_i32, %arg0 : i32, i32
  }
  func.func @transform_2(%arg0: i32) -> (i32, i32) {
    %c0_i32 = arith.constant 0 : i32
    %c0_i32_0 = arith.constant 0 : i32
    return %c0_i32, %arg0 : i32, i32
  }
  func.func @transform_3(%arg0: i32) -> (i32, i32) {
    %c0_i32 = arith.constant 0 : i32
    %c0_i32_0 = arith.constant 0 : i32
    return %c0_i32, %arg0 : i32, i32
  }
  func.func @transform_4(%arg0: i32) -> (i32, i32) {
    %c0_i32 = arith.constant 0 : i32
    %c0_i32_0 = arith.constant 0 : i32
    %c0_i32_1 = arith.constant 0 : i32
    return %c0_i32, %c0_i32_0 : i32, i32
  }
  func.func @transform_5(%arg0: i32) -> (i32, i32) {
    %c0_i32 = arith.constant 0 : i32
    %c0_i32_0 = arith.constant 0 : i32
    %c0_i32_1 = arith.constant 0 : i32
    return %c0_i32, %c0_i32_0 : i32, i32
  }
  func.func @transform_6(%arg0: i32) -> (i32, i32) {
    %c0_i32 = arith.constant 0 : i32
    %c0_i32_0 = arith.constant 0 : i32
    %c0_i32_1 = arith.constant 0 : i32
    return %c0_i32, %c0_i32_0 : i32, i32
  }
  func.func @transform_7(%arg0: i32) -> (i32, i32) {
    %c0_i32 = arith.constant 0 : i32
    %c0_i32_0 = arith.constant 0 : i32
    %c0_i32_1 = arith.constant 0 : i32
    return %c0_i32, %c0_i32_0 : i32, i32
  }
  func.func @transform_8(%arg0: i32) -> (i32, i32) {
    %c0_i32 = arith.constant 0 : i32
    %c0_i32_0 = arith.constant 0 : i32
    %c0_i32_1 = arith.constant 0 : i32
    return %c0_i32, %c0_i32_0 : i32, i32
  }
  func.func @transform_9(%arg0: i32) -> (i32, i32) {
    %c0_i32 = arith.constant 0 : i32
    %c0_i32_0 = arith.constant 0 : i32
    %c0_i32_1 = arith.constant 0 : i32
    return %c0_i32, %c0_i32_0 : i32, i32
  }
  func.func @transform_10(%arg0: i32) -> (i32, i32) {
    %c0_i32 = arith.constant 0 : i32
    %c0_i32_0 = arith.constant 0 : i32
    return %c0_i32, %arg0 : i32, i32
  }
}

</mosaic_0001>

<llo_original>
// kernel: tpu_custom_call.1
$region0: #{tpu_custom_call.1}
  #allocation0 [shape = 'u32[]', space=smem, size = 0x4, offset = 0x4, fixed_abs, tag = 'smem constant byte address 0x4 - core index']
  #allocation1 [shape = 'u32[144,128]{1,0:T(1,128)}', space=vmem, size = 0x12000, scoped, tag = 'internal scratch']
  %s0 = inlined_call_operand.vmem [shape: f32[1,2048], index: 0, kind: input, shape index: {}]
  %s1 = inlined_call_operand.vmem [shape: f32[1,2048], index: 1, kind: input, shape index: {}]
  %s2 = inlined_call_operand.vmem [shape: f32[1,2048], index: 2, kind: input, shape index: {}]
  %s3 = inlined_call_operand.vmem [shape: f32[1,2048], index: 3, kind: input, shape index: {}]
  %s4 = inlined_call_operand.vmem [shape: f32[32,4], index: 4, kind: input, shape index: {}]
  %s5 = inlined_call_operand.vmem [shape: f32[32,1], index: 5, kind: input, shape index: {}]
  %s6 = inlined_call_operand.vmem [shape: f32[32,32], index: 6, kind: input, shape index: {}]
  %s7 = inlined_call_operand.vmem [shape: f32[32,1], index: 7, kind: input, shape index: {}]
  %s8 = inlined_call_operand.vmem [shape: f32[2,32], index: 8, kind: input, shape index: {}]
  %s9 = inlined_call_operand.vmem [shape: f32[2,1], index: 9, kind: input, shape index: {}]
  %s10 = inlined_call_operand.hbm [shape: f32[2,2048], index: 10, kind: output, shape index: {}]
  %s11 = sld [smem:[#allocation0]]
  $region50: #{tpu_custom_call.1} parent=0
    _
  %s13 = ssub.s32 1, %s11
  %s14 = scalar_select 0, %s13, %s11
  $region1: #{tpu_custom_call.1} parent=0
    #allocation2 [shape = 'u8[16384]{0}', space=vmem, size = 0x4000, scoped, tag = 'output window, operand 0, single buffered']
    #allocation3 [shape = 's32[1]{0}', space=sflag, size = 0x4, scoped, tag = 'scoped memory for tpu_custom_call.1']
    %15 = vsyncpa [#allocation3], 0
    // Predicated region
    $region2: #{tpu_custom_call.1} parent=1 // pred_check
      _
    $region3: #{tpu_custom_call.1} parent=1 // pred_check_branch
      %17 = sbr.rel (0) target = $region5
    $region4: #{tpu_custom_call.1} parent=1 // pred_region
      _
    $region5: #{tpu_custom_call.1} parent=1 // pred_fallthru
      _
    // Predicated region
    $region6: #{tpu_custom_call.1} parent=1 // pred_check
      _
    $region7: #{tpu_custom_call.1} parent=1 // pred_check_branch
      %19 = sbr.rel (0) target = $region9
    $region8: #{tpu_custom_call.1} parent=1 // pred_region
      _
    $region9: #{tpu_custom_call.1} parent=1 // pred_fallthru
      _
    // Predicated region
    $region10: #{tpu_custom_call.1} parent=1 // pred_check
      _
    $region11: #{tpu_custom_call.1} parent=1 // pred_check_branch
      %21 = sbr.rel (0) target = $region13
    $region12: #{tpu_custom_call.1} parent=1 // pred_region
      _
    $region13: #{tpu_custom_call.1} parent=1 // pred_fallthru
      _
    // Predicated region
    $region14: #{tpu_custom_call.1} parent=1 // pred_check
      _
    $region15: #{tpu_custom_call.1} parent=1 // pred_check_branch
      %23 = sbr.rel (0) target = $region17
    $region16: #{tpu_custom_call.1} parent=1 // pred_region
      _
    $region17: #{tpu_custom_call.1} parent=1 // pred_fallthru
      _
    // Predicated region
    $region18: #{tpu_custom_call.1} parent=1 // pred_check
      _
    $region19: #{tpu_custom_call.1} parent=1 // pred_check_branch
      %25 = sbr.rel (0) target = $region21
    $region20: #{tpu_custom_call.1} parent=1 // pred_region
      _
    $region21: #{tpu_custom_call.1} parent=1 // pred_fallthru
      _
    // Predicated region
    $region22: #{tpu_custom_call.1} parent=1 // pred_check
      _
    $region23: #{tpu_custom_call.1} parent=1 // pred_check_branch
      %27 = sbr.rel (0) target = $region25
    $region24: #{tpu_custom_call.1} parent=1 // pred_region
      _
    $region25: #{tpu_custom_call.1} parent=1 // pred_fallthru
      _
    // Predicated region
    $region26: #{tpu_custom_call.1} parent=1 // pred_check
      _
    $region27: #{tpu_custom_call.1} parent=1 // pred_check_branch
      %29 = sbr.rel (0) target = $region29
    $region28: #{tpu_custom_call.1} parent=1 // pred_region
      _
    $region29: #{tpu_custom_call.1} parent=1 // pred_fallthru
      _
    // Predicated region
    $region30: #{tpu_custom_call.1} parent=1 // pred_check
      _
    $region31: #{tpu_custom_call.1} parent=1 // pred_check_branch
      %31 = sbr.rel (0) target = $region33
    $region32: #{tpu_custom_call.1} parent=1 // pred_region
      _
    $region33: #{tpu_custom_call.1} parent=1 // pred_fallthru
      _
    // Predicated region
    $region34: #{tpu_custom_call.1} parent=1 // pred_check
      _
    $region35: #{tpu_custom_call.1} parent=1 // pred_check_branch
      %33 = sbr.rel (0) target = $region37
    $region36: #{tpu_custom_call.1} parent=1 // pred_region
      _
    $region37: #{tpu_custom_call.1} parent=1 // pred_fallthru
      _
    // Predicated region
    $region38: #{tpu_custom_call.1} parent=1 // pred_check
      _
    $region39: #{tpu_custom_call.1} parent=1 // pred_check_branch
      %35 = sbr.rel (0) target = $region41
    $region40: #{tpu_custom_call.1} parent=1 // pred_region
      _
    $region41: #{tpu_custom_call.1} parent=1 // pred_fallthru
      _
    %v36 = vld [vmem:[%s0] sm:$0xff]
    %v37 = vld [vmem:[%s0 + $0x8] sm:$0xff]
    %v38 = vld [vmem:[%s1] sm:$0xff]
    %v39 = vld [vmem:[%s1 + $0x8] sm:$0xff]
    %v40 = vld [vmem:[%s2] sm:$0xff]
    %v41 = vld [vmem:[%s2 + $0x8] sm:$0xff]
    %v42 = vld [vmem:[%s3] sm:$0xff]
    %v43 = vld [vmem:[%s3 + $0x8] sm:$0xff]
    %v44 = vld [vmem:[%s4] sm:$0xff]
    %v45 = vld [vmem:[%s4 + $0x8] sm:$0xff]
    %v46 = vld [vmem:[%s4 + $0x10] sm:$0xff]
    %v47 = vld [vmem:[%s4 + $0x18] sm:$0xff]
    %v48 = vld [vmem:[%s5] sm:$0xff]
    %v49 = vld [vmem:[%s5 + $0x8] sm:$0xff]
    %v50 = vld [vmem:[%s5 + $0x10] sm:$0xff]
    %v51 = vld [vmem:[%s5 + $0x18] sm:$0xff]
    %53 = vset.pattern.permute.xlu0 0
    %54 = vperm.xlu0 %53, %v44
    %v55 = vpop.permute.xlu0 %54
    %58 = vset.pattern.permute.xlu0 0
    %59 = vperm.xlu0 %58, %v45
    %v60 = vpop.permute.xlu0 %59
    %63 = vset.pattern.permute.xlu0 0
    %64 = vperm.xlu0 %63, %v46
    %v65 = vpop.permute.xlu0 %64
    %68 = vset.pattern.permute.xlu0 0
    %69 = vperm.xlu0 %68, %v47
    %v70 = vpop.permute.xlu0 %69
    %v74 = vlaneseq
    %v75 = vshrl.u32 %v74, 7
    %v76 = vsub.s32 0, %v75
    %v77 = vrot.slane %v36, %v76
    %v78 = vlaneseq
    %v79 = vshrl.u32 %v78, 7
    %v80 = vsub.s32 1, %v79
    %v81 = vrot.slane %v36, %v80
    %v82 = vlaneseq
    %v83 = vshrl.u32 %v82, 7
    %v84 = vsub.s32 2, %v83
    %v85 = vrot.slane %v36, %v84
    %v86 = vlaneseq
    %v87 = vshrl.u32 %v86, 7
    %v88 = vsub.s32 3, %v87
    %v89 = vrot.slane %v36, %v88
    %v90 = vlaneseq
    %v91 = vshrl.u32 %v90, 7
    %v92 = vsub.s32 4, %v91
    %v93 = vrot.slane %v36, %v92
    %v94 = vlaneseq
    %v95 = vshrl.u32 %v94, 7
    %v96 = vsub.s32 5, %v95
    %v97 = vrot.slane %v36, %v96
    %v98 = vlaneseq
    %v99 = vshrl.u32 %v98, 7
    %v100 = vsub.s32 6, %v99
    %v101 = vrot.slane %v36, %v100
    %v102 = vlaneseq
    %v103 = vshrl.u32 %v102, 7
    %v104 = vsub.s32 7, %v103
    %v105 = vrot.slane %v36, %v104
    %v106 = vlaneseq
    %v107 = vshrl.u32 %v106, 7
    %v108 = vsub.s32 0, %v107
    %v109 = vrot.slane %v37, %v108
    %v110 = vlaneseq
    %v111 = vshrl.u32 %v110, 7
    %v112 = vsub.s32 1, %v111
    %v113 = vrot.slane %v37, %v112
    %v114 = vlaneseq
    %v115 = vshrl.u32 %v114, 7
    %v116 = vsub.s32 2, %v115
    %v117 = vrot.slane %v37, %v116
    %v118 = vlaneseq
    %v119 = vshrl.u32 %v118, 7
    %v120 = vsub.s32 3, %v119
    %v121 = vrot.slane %v37, %v120
    %v122 = vlaneseq
    %v123 = vshrl.u32 %v122, 7
    %v124 = vsub.s32 4, %v123
    %v125 = vrot.slane %v37, %v124
    %v126 = vlaneseq
    %v127 = vshrl.u32 %v126, 7
    %v128 = vsub.s32 5, %v127
    %v129 = vrot.slane %v37, %v128
    %v130 = vlaneseq
    %v131 = vshrl.u32 %v130, 7
    %v132 = vsub.s32 6, %v131
    %v133 = vrot.slane %v37, %v132
    %v134 = vlaneseq
    %v135 = vshrl.u32 %v134, 7
    %v136 = vsub.s32 7, %v135
    %v137 = vrot.slane %v37, %v136
    %v154 = vmul.f32 %v55, %v77
    %v155 = vmul.f32 %v55, %v81
    %v156 = vmul.f32 %v55, %v85
    %v157 = vmul.f32 %v55, %v89
    %v158 = vmul.f32 %v55, %v93
    %v159 = vmul.f32 %v55, %v97
    %v160 = vmul.f32 %v55, %v101
    %v161 = vmul.f32 %v55, %v105
    %v162 = vmul.f32 %v55, %v109
    %v163 = vmul.f32 %v55, %v113
    %v164 = vmul.f32 %v55, %v117
    %v165 = vmul.f32 %v55, %v121
    %v166 = vmul.f32 %v55, %v125
    %v167 = vmul.f32 %v55, %v129
    %v168 = vmul.f32 %v55, %v133
    %v169 = vmul.f32 %v55, %v137
    %v170 = vmul.f32 %v60, %v77
    %v171 = vmul.f32 %v60, %v81
    %v172 = vmul.f32 %v60, %v85
    %v173 = vmul.f32 %v60, %v89
    %v174 = vmul.f32 %v60, %v93
    %v175 = vmul.f32 %v60, %v97
    %v176 = vmul.f32 %v60, %v101
    %v177 = vmul.f32 %v60, %v105
    %v178 = vmul.f32 %v60, %v109
    %v179 = vmul.f32 %v60, %v113
    %v180 = vmul.f32 %v60, %v117
    %v181 = vmul.f32 %v60, %v121
    %v182 = vmul.f32 %v60, %v125
    %v183 = vmul.f32 %v60, %v129
    %v184 = vmul.f32 %v60, %v133
    %v185 = vmul.f32 %v60, %v137
    %v186 = vmul.f32 %v65, %v77
    %v187 = vmul.f32 %v65, %v81
    %v188 = vmul.f32 %v65, %v85
    %v189 = vmul.f32 %v65, %v89
    %v190 = vmul.f32 %v65, %v93
    %v191 = vmul.f32 %v65, %v97
    %v192 = vmul.f32 %v65, %v101
    %v193 = vmul.f32 %v65, %v105
    %v194 = vmul.f32 %v65, %v109
    %v195 = vmul.f32 %v65, %v113
    %v196 = vmul.f32 %v65, %v117
    %v197 = vmul.f32 %v65, %v121
    %v198 = vmul.f32 %v65, %v125
    %v199 = vmul.f32 %v65, %v129
    %v200 = vmul.f32 %v65, %v133
    %v201 = vmul.f32 %v65, %v137
    %v202 = vmul.f32 %v70, %v77
    %v203 = vmul.f32 %v70, %v81
    %v204 = vmul.f32 %v70, %v85
    %v205 = vmul.f32 %v70, %v89
    %v206 = vmul.f32 %v70, %v93
    %v207 = vmul.f32 %v70, %v97
    %v208 = vmul.f32 %v70, %v101
    %v209 = vmul.f32 %v70, %v105
    %v210 = vmul.f32 %v70, %v109
    %v211 = vmul.f32 %v70, %v113
    %v212 = vmul.f32 %v70, %v117
    %v213 = vmul.f32 %v70, %v121
    %v214 = vmul.f32 %v70, %v125
    %v215 = vmul.f32 %v70, %v129
    %v216 = vmul.f32 %v70, %v133
    %v217 = vmul.f32 %v70, %v137
    %218 = vset.pattern.permute.xlu0 1
    %219 = vperm.xlu0 %218, %v44
    %v220 = vpop.permute.xlu0 %219
    %222 = vset.pattern.permute.xlu0 1
    %223 = vperm.xlu0 %222, %v45
    %v224 = vpop.permute.xlu0 %223
    %226 = vset.pattern.permute.xlu0 1
    %227 = vperm.xlu0 %226, %v46
    %v228 = vpop.permute.xlu0 %227
    %230 = vset.pattern.permute.xlu0 1
    %231 = vperm.xlu0 %230, %v47
    %v232 = vpop.permute.xlu0 %231
    %v236 = vlaneseq
    %v237 = vshrl.u32 %v236, 7
    %v238 = vsub.s32 0, %v237
    %v239 = vrot.slane %v38, %v238
    %v240 = vlaneseq
    %v241 = vshrl.u32 %v240, 7
    %v242 = vsub.s32 1, %v241
    %v243 = vrot.slane %v38, %v242
    %v244 = vlaneseq
    %v245 = vshrl.u32 %v244, 7
    %v246 = vsub.s32 2, %v245
    %v247 = vrot.slane %v38, %v246
    %v248 = vlaneseq
    %v249 = vshrl.u32 %v248, 7
    %v250 = vsub.s32 3, %v249
    %v251 = vrot.slane %v38, %v250
    %v252 = vlaneseq
    %v253 = vshrl.u32 %v252, 7
    %v254 = vsub.s32 4, %v253
    %v255 = vrot.slane %v38, %v254
    %v256 = vlaneseq
    %v257 = vshrl.u32 %v256, 7
    %v258 = vsub.s32 5, %v257
    %v259 = vrot.slane %v38, %v258
    %v260 = vlaneseq
    %v261 = vshrl.u32 %v260, 7
    %v262 = vsub.s32 6, %v261
    %v263 = vrot.slane %v38, %v262
    %v264 = vlaneseq
    %v265 = vshrl.u32 %v264, 7
    %v266 = vsub.s32 7, %v265
    %v267 = vrot.slane %v38, %v266
    %v268 = vlaneseq
    %v269 = vshrl.u32 %v268, 7
    %v270 = vsub.s32 0, %v269
    %v271 = vrot.slane %v39, %v270
    %v272 = vlaneseq
    %v273 = vshrl.u32 %v272, 7
    %v274 = vsub.s32 1, %v273
    %v275 = vrot.slane %v39, %v274
    %v276 = vlaneseq
    %v277 = vshrl.u32 %v276, 7
    %v278 = vsub.s32 2, %v277
    %v279 = vrot.slane %v39, %v278
    %v280 = vlaneseq
    %v281 = vshrl.u32 %v280, 7
    %v282 = vsub.s32 3, %v281
    %v283 = vrot.slane %v39, %v282
    %v284 = vlaneseq
    %v285 = vshrl.u32 %v284, 7
    %v286 = vsub.s32 4, %v285
    %v287 = vrot.slane %v39, %v286
    %v288 = vlaneseq
    %v289 = vshrl.u32 %v288, 7
    %v290 = vsub.s32 5, %v289
    %v291 = vrot.slane %v39, %v290
    %v292 = vlaneseq
    %v293 = vshrl.u32 %v292, 7
    %v294 = vsub.s32 6, %v293
    %v295 = vrot.slane %v39, %v294
    %v296 = vlaneseq
    %v297 = vshrl.u32 %v296, 7
    %v298 = vsub.s32 7, %v297
    %v299 = vrot.slane %v39, %v298
    %v316 = vmul.f32 %v220, %v239
    %v317 = vmul.f32 %v220, %v243
    %v318 = vmul.f32 %v220, %v247
    %v319 = vmul.f32 %v220, %v251
    %v320 = vmul.f32 %v220, %v255
    %v321 = vmul.f32 %v220, %v259
    %v322 = vmul.f32 %v220, %v263
    %v323 = vmul.f32 %v220, %v267
    %v324 = vmul.f32 %v220, %v271
    %v325 = vmul.f32 %v220, %v275
    %v326 = vmul.f32 %v220, %v279
    %v327 = vmul.f32 %v220, %v283
    %v328 = vmul.f32 %v220, %v287
    %v329 = vmul.f32 %v220, %v291
    %v330 = vmul.f32 %v220, %v295
    %v331 = vmul.f32 %v220, %v299
    %v332 = vmul.f32 %v224, %v239
    %v333 = vmul.f32 %v224, %v243
    %v334 = vmul.f32 %v224, %v247
    %v335 = vmul.f32 %v224, %v251
    %v336 = vmul.f32 %v224, %v255
    %v337 = vmul.f32 %v224, %v259
    %v338 = vmul.f32 %v224, %v263
    %v339 = vmul.f32 %v224, %v267
    %v340 = vmul.f32 %v224, %v271
    %v341 = vmul.f32 %v224, %v275
    %v342 = vmul.f32 %v224, %v279
    %v343 = vmul.f32 %v224, %v283
    %v344 = vmul.f32 %v224, %v287
    %v345 = vmul.f32 %v224, %v291
    %v346 = vmul.f32 %v224, %v295
    %v347 = vmul.f32 %v224, %v299
    %v348 = vmul.f32 %v228, %v239
    %v349 = vmul.f32 %v228, %v243
    %v350 = vmul.f32 %v228, %v247
    %v351 = vmul.f32 %v228, %v251
    %v352 = vmul.f32 %v228, %v255
    %v353 = vmul.f32 %v228, %v259
    %v354 = vmul.f32 %v228, %v263
    %v355 = vmul.f32 %v228, %v267
    %v356 = vmul.f32 %v228, %v271
    %v357 = vmul.f32 %v228, %v275
    %v358 = vmul.f32 %v228, %v279
    %v359 = vmul.f32 %v228, %v283
    %v360 = vmul.f32 %v228, %v287
    %v361 = vmul.f32 %v228, %v291
    %v362 = vmul.f32 %v228, %v295
    %v363 = vmul.f32 %v228, %v299
    %v364 = vmul.f32 %v232, %v239
    %v365 = vmul.f32 %v232, %v243
    %v366 = vmul.f32 %v232, %v247
    %v367 = vmul.f32 %v232, %v251
    %v368 = vmul.f32 %v232, %v255
    %v369 = vmul.f32 %v232, %v259
    %v370 = vmul.f32 %v232, %v263
    %v371 = vmul.f32 %v232, %v267
    %v372 = vmul.f32 %v232, %v271
    %v373 = vmul.f32 %v232, %v275
    %v374 = vmul.f32 %v232, %v279
    %v375 = vmul.f32 %v232, %v283
    %v376 = vmul.f32 %v232, %v287
    %v377 = vmul.f32 %v232, %v291
    %v378 = vmul.f32 %v232, %v295
    %v379 = vmul.f32 %v232, %v299
    %v380 = vadd.f32 %v154, %v316
    %v381 = vadd.f32 %v155, %v317
    %v382 = vadd.f32 %v156, %v318
    %v383 = vadd.f32 %v157, %v319
    %v384 = vadd.f32 %v158, %v320
    %v385 = vadd.f32 %v159, %v321
    %v386 = vadd.f32 %v160, %v322
    %v387 = vadd.f32 %v161, %v323
    %v388 = vadd.f32 %v162, %v324
    %v389 = vadd.f32 %v163, %v325
    %v390 = vadd.f32 %v164, %v326
    %v391 = vadd.f32 %v165, %v327
    %v392 = vadd.f32 %v166, %v328
    %v393 = vadd.f32 %v167, %v329
    %v394 = vadd.f32 %v168, %v330
    %v395 = vadd.f32 %v169, %v331
    %v396 = vadd.f32 %v170, %v332
    %v397 = vadd.f32 %v171, %v333
    %v398 = vadd.f32 %v172, %v334
    %v399 = vadd.f32 %v173, %v335
    %v400 = vadd.f32 %v174, %v336
    %v401 = vadd.f32 %v175, %v337
    %v402 = vadd.f32 %v176, %v338
    %v403 = vadd.f32 %v177, %v339
    %v404 = vadd.f32 %v178, %v340
    %v405 = vadd.f32 %v179, %v341
    %v406 = vadd.f32 %v180, %v342
    %v407 = vadd.f32 %v181, %v343
    %v408 = vadd.f32 %v182, %v344
    %v409 = vadd.f32 %v183, %v345
    %v410 = vadd.f32 %v184, %v346
    %v411 = vadd.f32 %v185, %v347
    %v412 = vadd.f32 %v186, %v348
    %v413 = vadd.f32 %v187, %v349
    %v414 = vadd.f32 %v188, %v350
    %v415 = vadd.f32 %v189, %v351
    %v416 = vadd.f32 %v190, %v352
    %v417 = vadd.f32 %v191, %v353
    %v418 = vadd.f32 %v192, %v354
    %v419 = vadd.f32 %v193, %v355
    %v420 = vadd.f32 %v194, %v356
    %v421 = vadd.f32 %v195, %v357
    %v422 = vadd.f32 %v196, %v358
    %v423 = vadd.f32 %v197, %v359
    %v424 = vadd.f32 %v198, %v360
    %v425 = vadd.f32 %v199, %v361
    %v426 = vadd.f32 %v200, %v362
    %v427 = vadd.f32 %v201, %v363
    %v428 = vadd.f32 %v202, %v364
    %v429 = vadd.f32 %v203, %v365
    %v430 = vadd.f32 %v204, %v366
    %v431 = vadd.f32 %v205, %v367
    %v432 = vadd.f32 %v206, %v368
    %v433 = vadd.f32 %v207, %v369
    %v434 = vadd.f32 %v208, %v370
    %v435 = vadd.f32 %v209, %v371
    %v436 = vadd.f32 %v210, %v372
    %v437 = vadd.f32 %v211, %v373
    %v438 = vadd.f32 %v212, %v374
    %v439 = vadd.f32 %v213, %v375
    %v440 = vadd.f32 %v214, %v376
    %v441 = vadd.f32 %v215, %v377
    %v442 = vadd.f32 %v216, %v378
    %v443 = vadd.f32 %v217, %v379
    %444 = vset.pattern.permute.xlu0 2
    %445 = vperm.xlu0 %444, %v44
    %v446 = vpop.permute.xlu0 %445
    %448 = vset.pattern.permute.xlu0 2
    %449 = vperm.xlu0 %448, %v45
    %v450 = vpop.permute.xlu0 %449
    %452 = vset.pattern.permute.xlu0 2
    %453 = vperm.xlu0 %452, %v46
    %v454 = vpop.permute.xlu0 %453
    %456 = vset.pattern.permute.xlu0 2
    %457 = vperm.xlu0 %456, %v47
    %v458 = vpop.permute.xlu0 %457
    %v462 = vlaneseq
    %v463 = vshrl.u32 %v462, 7
    %v464 = vsub.s32 0, %v463
    %v465 = vrot.slane %v40, %v464
    %v466 = vlaneseq
    %v467 = vshrl.u32 %v466, 7
    %v468 = vsub.s32 1, %v467
    %v469 = vrot.slane %v40, %v468
    %v470 = vlaneseq
    %v471 = vshrl.u32 %v470, 7
    %v472 = vsub.s32 2, %v471
    %v473 = vrot.slane %v40, %v472
    %v474 = vlaneseq
    %v475 = vshrl.u32 %v474, 7
    %v476 = vsub.s32 3, %v475
    %v477 = vrot.slane %v40, %v476
    %v478 = vlaneseq
    %v479 = vshrl.u32 %v478, 7
    %v480 = vsub.s32 4, %v479
    %v481 = vrot.slane %v40, %v480
    %v482 = vlaneseq
    %v483 = vshrl.u32 %v482, 7
    %v484 = vsub.s32 5, %v483
    %v485 = vrot.slane %v40, %v484
    %v486 = vlaneseq
    %v487 = vshrl.u32 %v486, 7
    %v488 = vsub.s32 6, %v487
    %v489 = vrot.slane %v40, %v488
    %v490 = vlaneseq
    %v491 = vshrl.u32 %v490, 7
    %v492 = vsub.s32 7, %v491
    %v493 = vrot.slane %v40, %v492
    %v494 = vlaneseq
    %v495 = vshrl.u32 %v494, 7
    %v496 = vsub.s32 0, %v495
    %v497 = vrot.slane %v41, %v496
    %v498 = vlaneseq
    %v499 = vshrl.u32 %v498, 7
    %v500 = vsub.s32 1, %v499
    %v501 = vrot.slane %v41, %v500
    %v502 = vlaneseq
    %v503 = vshrl.u32 %v502, 7
    %v504 = vsub.s32 2, %v503
    %v505 = vrot.slane %v41, %v504
    %v506 = vlaneseq
    %v507 = vshrl.u32 %v506, 7
    %v508 = vsub.s32 3, %v507
    %v509 = vrot.slane %v41, %v508
    %v510 = vlaneseq
    %v511 = vshrl.u32 %v510, 7
    %v512 = vsub.s32 4, %v511
    %v513 = vrot.slane %v41, %v512
    %v514 = vlaneseq
    %v515 = vshrl.u32 %v514, 7
    %v516 = vsub.s32 5, %v515
    %v517 = vrot.slane %v41, %v516
    %v518 = vlaneseq
    %v519 = vshrl.u32 %v518, 7
    %v520 = vsub.s32 6, %v519
    %v521 = vrot.slane %v41, %v520
    %v522 = vlaneseq
    %v523 = vshrl.u32 %v522, 7
    %v524 = vsub.s32 7, %v523
    %v525 = vrot.slane %v41, %v524
    %v542 = vmul.f32 %v446, %v465
    %v543 = vmul.f32 %v446, %v469
    %v544 = vmul.f32 %v446, %v473
    %v545 = vmul.f32 %v446, %v477
    %v546 = vmul.f32 %v446, %v481
    %v547 = vmul.f32 %v446, %v485
    %v548 = vmul.f32 %v446, %v489
    %v549 = vmul.f32 %v446, %v493
    %v550 = vmul.f32 %v446, %v497
    %v551 = vmul.f32 %v446, %v501
    %v552 = vmul.f32 %v446, %v505
    %v553 = vmul.f32 %v446, %v509
    %v554 = vmul.f32 %v446, %v513
    %v555 = vmul.f32 %v446, %v517
    %v556 = vmul.f32 %v446, %v521
    %v557 = vmul.f32 %v446, %v525
    %v558 = vmul.f32 %v450, %v465
    %v559 = vmul.f32 %v450, %v469
    %v560 = vmul.f32 %v450, %v473
    %v561 = vmul.f32 %v450, %v477
    %v562 = vmul.f32 %v450, %v481
    %v563 = vmul.f32 %v450, %v485
    %v564 = vmul.f32 %v450, %v489
    %v565 = vmul.f32 %v450, %v493
    %v566 = vmul.f32 %v450, %v497
    %v567 = vmul.f32 %v450, %v501
    %v568 = vmul.f32 %v450, %v505
    %v569 = vmul.f32 %v450, %v509
    %v570 = vmul.f32 %v450, %v513
    %v571 = vmul.f32 %v450, %v517
    %v572 = vmul.f32 %v450, %v521
    %v573 = vmul.f32 %v450, %v525
    %v574 = vmul.f32 %v454, %v465
    %v575 = vmul.f32 %v454, %v469
    %v576 = vmul.f32 %v454, %v473
    %v577 = vmul.f32 %v454, %v477
    %v578 = vmul.f32 %v454, %v481
    %v579 = vmul.f32 %v454, %v485
    %v580 = vmul.f32 %v454, %v489
    %v581 = vmul.f32 %v454, %v493
    %v582 = vmul.f32 %v454, %v497
    %v583 = vmul.f32 %v454, %v501
    %v584 = vmul.f32 %v454, %v505
    %v585 = vmul.f32 %v454, %v509
    %v586 = vmul.f32 %v454, %v513
    %v587 = vmul.f32 %v454, %v517
    %v588 = vmul.f32 %v454, %v521
    %v589 = vmul.f32 %v454, %v525
    %v590 = vmul.f32 %v458, %v465
    %v591 = vmul.f32 %v458, %v469
    %v592 = vmul.f32 %v458, %v473
    %v593 = vmul.f32 %v458, %v477
    %v594 = vmul.f32 %v458, %v481
    %v595 = vmul.f32 %v458, %v485
    %v596 = vmul.f32 %v458, %v489
    %v597 = vmul.f32 %v458, %v493
    %v598 = vmul.f32 %v458, %v497
    %v599 = vmul.f32 %v458, %v501
    %v600 = vmul.f32 %v458, %v505
    %v601 = vmul.f32 %v458, %v509
    %v602 = vmul.f32 %v458, %v513
    %v603 = vmul.f32 %v458, %v517
    %v604 = vmul.f32 %v458, %v521
    %v605 = vmul.f32 %v458, %v525
    %v606 = vadd.f32 %v380, %v542
    %v607 = vadd.f32 %v381, %v543
    %v608 = vadd.f32 %v382, %v544
    %v609 = vadd.f32 %v383, %v545
    %v610 = vadd.f32 %v384, %v546
    %v611 = vadd.f32 %v385, %v547
    %v612 = vadd.f32 %v386, %v548
    %v613 = vadd.f32 %v387, %v549
    %v614 = vadd.f32 %v388, %v550
    %v615 = vadd.f32 %v389, %v551
    %v616 = vadd.f32 %v390, %v552
    %v617 = vadd.f32 %v391, %v553
    %v618 = vadd.f32 %v392, %v554
    %v619 = vadd.f32 %v393, %v555
    %v620 = vadd.f32 %v394, %v556
    %v621 = vadd.f32 %v395, %v557
    %v622 = vadd.f32 %v396, %v558
    %v623 = vadd.f32 %v397, %v559
    %v624 = vadd.f32 %v398, %v560
    %v625 = vadd.f32 %v399, %v561
    %v626 = vadd.f32 %v400, %v562
    %v627 = vadd.f32 %v401, %v563
    %v628 = vadd.f32 %v402, %v564
    %v629 = vadd.f32 %v403, %v565
    %v630 = vadd.f32 %v404, %v566
    %v631 = vadd.f32 %v405, %v567
    %v632 = vadd.f32 %v406, %v568
    %v633 = vadd.f32 %v407, %v569
    %v634 = vadd.f32 %v408, %v570
    %v635 = vadd.f32 %v409, %v571
    %v636 = vadd.f32 %v410, %v572
    %v637 = vadd.f32 %v411, %v573
    %v638 = vadd.f32 %v412, %v574
    %v639 = vadd.f32 %v413, %v575
    %v640 = vadd.f32 %v414, %v576
    %v641 = vadd.f32 %v415, %v577
    %v642 = vadd.f32 %v416, %v578
    %v643 = vadd.f32 %v417, %v579
    %v644 = vadd.f32 %v418, %v580
    %v645 = vadd.f32 %v419, %v581
    %v646 = vadd.f32 %v420, %v582
    %v647 = vadd.f32 %v421, %v583
    %v648 = vadd.f32 %v422, %v584
    %v649 = vadd.f32 %v423, %v585
    %v650 = vadd.f32 %v424, %v586
    %v651 = vadd.f32 %v425, %v587
    %v652 = vadd.f32 %v426, %v588
    %v653 = vadd.f32 %v427, %v589
    %v654 = vadd.f32 %v428, %v590
    %v655 = vadd.f32 %v429, %v591
    %v656 = vadd.f32 %v430, %v592
    %v657 = vadd.f32 %v431, %v593
    %v658 = vadd.f32 %v432, %v594
    %v659 = vadd.f32 %v433, %v595
    %v660 = vadd.f32 %v434, %v596
    %v661 = vadd.f32 %v435, %v597
    %v662 = vadd.f32 %v436, %v598
    %v663 = vadd.f32 %v437, %v599
    %v664 = vadd.f32 %v438, %v600
    %v665 = vadd.f32 %v439, %v601
    %v666 = vadd.f32 %v440, %v602
    %v667 = vadd.f32 %v441, %v603
    %v668 = vadd.f32 %v442, %v604
    %v669 = vadd.f32 %v443, %v605
    %670 = vset.pattern.permute.xlu0 3
    %671 = vperm.xlu0 %670, %v44
    %v672 = vpop.permute.xlu0 %671
    %674 = vset.pattern.permute.xlu0 3
    %675 = vperm.xlu0 %674, %v45
    %v676 = vpop.permute.xlu0 %675
    %678 = vset.pattern.permute.xlu0 3
    %679 = vperm.xlu0 %678, %v46
    %v680 = vpop.permute.xlu0 %679
    %682 = vset.pattern.permute.xlu0 3
    %683 = vperm.xlu0 %682, %v47
    %v684 = vpop.permute.xlu0 %683
    %v688 = vlaneseq
    %v689 = vshrl.u32 %v688, 7
    %v690 = vsub.s32 0, %v689
    %v691 = vrot.slane %v42, %v690
    %v692 = vlaneseq
    %v693 = vshrl.u32 %v692, 7
    %v694 = vsub.s32 1, %v693
    %v695 = vrot.slane %v42, %v694
    %v696 = vlaneseq
    %v697 = vshrl.u32 %v696, 7
    %v698 = vsub.s32 2, %v697
    %v699 = vrot.slane %v42, %v698
    %v700 = vlaneseq
    %v701 = vshrl.u32 %v700, 7
    %v702 = vsub.s32 3, %v701
    %v703 = vrot.slane %v42, %v702
    %v704 = vlaneseq
    %v705 = vshrl.u32 %v704, 7
    %v706 = vsub.s32 4, %v705
    %v707 = vrot.slane %v42, %v706
    %v708 = vlaneseq
    %v709 = vshrl.u32 %v708, 7
    %v710 = vsub.s32 5, %v709
    %v711 = vrot.slane %v42, %v710
    %v712 = vlaneseq
    %v713 = vshrl.u32 %v712, 7
    %v714 = vsub.s32 6, %v713
    %v715 = vrot.slane %v42, %v714
    %v716 = vlaneseq
    %v717 = vshrl.u32 %v716, 7
    %v718 = vsub.s32 7, %v717
    %v719 = vrot.slane %v42, %v718
    %v720 = vlaneseq
    %v721 = vshrl.u32 %v720, 7
    %v722 = vsub.s32 0, %v721
    %v723 = vrot.slane %v43, %v722
    %v724 = vlaneseq
    %v725 = vshrl.u32 %v724, 7
    %v726 = vsub.s32 1, %v725
    %v727 = vrot.slane %v43, %v726
    %v728 = vlaneseq
    %v729 = vshrl.u32 %v728, 7
    %v730 = vsub.s32 2, %v729
    %v731 = vrot.slane %v43, %v730
    %v732 = vlaneseq
    %v733 = vshrl.u32 %v732, 7
    %v734 = vsub.s32 3, %v733
    %v735 = vrot.slane %v43, %v734
    %v736 = vlaneseq
    %v737 = vshrl.u32 %v736, 7
    %v738 = vsub.s32 4, %v737
    %v739 = vrot.slane %v43, %v738
    %v740 = vlaneseq
    %v741 = vshrl.u32 %v740, 7
    %v742 = vsub.s32 5, %v741
    %v743 = vrot.slane %v43, %v742
    %v744 = vlaneseq
    %v745 = vshrl.u32 %v744, 7
    %v746 = vsub.s32 6, %v745
    %v747 = vrot.slane %v43, %v746
    %v748 = vlaneseq
    %v749 = vshrl.u32 %v748, 7
    %v750 = vsub.s32 7, %v749
    %v751 = vrot.slane %v43, %v750
    %v768 = vmul.f32 %v672, %v691
    %v769 = vmul.f32 %v672, %v695
    %v770 = vmul.f32 %v672, %v699
    %v771 = vmul.f32 %v672, %v703
    %v772 = vmul.f32 %v672, %v707
    %v773 = vmul.f32 %v672, %v711
    %v774 = vmul.f32 %v672, %v715
    %v775 = vmul.f32 %v672, %v719
    %v776 = vmul.f32 %v672, %v723
    %v777 = vmul.f32 %v672, %v727
    %v778 = vmul.f32 %v672, %v731
    %v779 = vmul.f32 %v672, %v735
    %v780 = vmul.f32 %v672, %v739
    %v781 = vmul.f32 %v672, %v743
    %v782 = vmul.f32 %v672, %v747
    %v783 = vmul.f32 %v672, %v751
    %v784 = vmul.f32 %v676, %v691
    %v785 = vmul.f32 %v676, %v695
    %v786 = vmul.f32 %v676, %v699
    %v787 = vmul.f32 %v676, %v703
    %v788 = vmul.f32 %v676, %v707
    %v789 = vmul.f32 %v676, %v711
    %v790 = vmul.f32 %v676, %v715
    %v791 = vmul.f32 %v676, %v719
    %v792 = vmul.f32 %v676, %v723
    %v793 = vmul.f32 %v676, %v727
    %v794 = vmul.f32 %v676, %v731
    %v795 = vmul.f32 %v676, %v735
    %v796 = vmul.f32 %v676, %v739
    %v797 = vmul.f32 %v676, %v743
    %v798 = vmul.f32 %v676, %v747
    %v799 = vmul.f32 %v676, %v751
    %v800 = vmul.f32 %v680, %v691
    %v801 = vmul.f32 %v680, %v695
    %v802 = vmul.f32 %v680, %v699
    %v803 = vmul.f32 %v680, %v703
    %v804 = vmul.f32 %v680, %v707
    %v805 = vmul.f32 %v680, %v711
    %v806 = vmul.f32 %v680, %v715
    %v807 = vmul.f32 %v680, %v719
    %v808 = vmul.f32 %v680, %v723
    %v809 = vmul.f32 %v680, %v727
    %v810 = vmul.f32 %v680, %v731
    %v811 = vmul.f32 %v680, %v735
    %v812 = vmul.f32 %v680, %v739
    %v813 = vmul.f32 %v680, %v743
    %v814 = vmul.f32 %v680, %v747
    %v815 = vmul.f32 %v680, %v751
    %v816 = vmul.f32 %v684, %v691
    %v817 = vmul.f32 %v684, %v695
    %v818 = vmul.f32 %v684, %v699
    %v819 = vmul.f32 %v684, %v703
    %v820 = vmul.f32 %v684, %v707
    %v821 = vmul.f32 %v684, %v711
    %v822 = vmul.f32 %v684, %v715
    %v823 = vmul.f32 %v684, %v719
    %v824 = vmul.f32 %v684, %v723
    %v825 = vmul.f32 %v684, %v727
    %v826 = vmul.f32 %v684, %v731
    %v827 = vmul.f32 %v684, %v735
    %v828 = vmul.f32 %v684, %v739
    %v829 = vmul.f32 %v684, %v743
    %v830 = vmul.f32 %v684, %v747
    %v831 = vmul.f32 %v684, %v751
    %v832 = vadd.f32 %v606, %v768
    %v833 = vadd.f32 %v607, %v769
    %v834 = vadd.f32 %v608, %v770
    %v835 = vadd.f32 %v609, %v771
    %v836 = vadd.f32 %v610, %v772
    %v837 = vadd.f32 %v611, %v773
    %v838 = vadd.f32 %v612, %v774
    %v839 = vadd.f32 %v613, %v775
    %v840 = vadd.f32 %v614, %v776
    %v841 = vadd.f32 %v615, %v777
    %v842 = vadd.f32 %v616, %v778
    %v843 = vadd.f32 %v617, %v779
    %v844 = vadd.f32 %v618, %v780
    %v845 = vadd.f32 %v619, %v781
    %v846 = vadd.f32 %v620, %v782
    %v847 = vadd.f32 %v621, %v783
    %v848 = vadd.f32 %v622, %v784
    %v849 = vadd.f32 %v623, %v785
    %v850 = vadd.f32 %v624, %v786
    %v851 = vadd.f32 %v625, %v787
    %v852 = vadd.f32 %v626, %v788
    %v853 = vadd.f32 %v627, %v789
    %v854 = vadd.f32 %v628, %v790
    %v855 = vadd.f32 %v629, %v791
    %v856 = vadd.f32 %v630, %v792
    %v857 = vadd.f32 %v631, %v793
    %v858 = vadd.f32 %v632, %v794
    %v859 = vadd.f32 %v633, %v795
    %v860 = vadd.f32 %v634, %v796
    %v861 = vadd.f32 %v635, %v797
    %v862 = vadd.f32 %v636, %v798
    %v863 = vadd.f32 %v637, %v799
    %v864 = vadd.f32 %v638, %v800
    %v865 = vadd.f32 %v639, %v801
    %v866 = vadd.f32 %v640, %v802
    %v867 = vadd.f32 %v641, %v803
    %v868 = vadd.f32 %v642, %v804
    %v869 = vadd.f32 %v643, %v805
    %v870 = vadd.f32 %v644, %v806
    %v871 = vadd.f32 %v645, %v807
    %v872 = vadd.f32 %v646, %v808
    %v873 = vadd.f32 %v647, %v809
    %v874 = vadd.f32 %v648, %v810
    %v875 = vadd.f32 %v649, %v811
    %v876 = vadd.f32 %v650, %v812
    %v877 = vadd.f32 %v651, %v813
    %v878 = vadd.f32 %v652, %v814
    %v879 = vadd.f32 %v653, %v815
    %v880 = vadd.f32 %v654, %v816
    %v881 = vadd.f32 %v655, %v817
    %v882 = vadd.f32 %v656, %v818
    %v883 = vadd.f32 %v657, %v819
    %v884 = vadd.f32 %v658, %v820
    %v885 = vadd.f32 %v659, %v821
    %v886 = vadd.f32 %v660, %v822
    %v887 = vadd.f32 %v661, %v823
    %v888 = vadd.f32 %v662, %v824
    %v889 = vadd.f32 %v663, %v825
    %v890 = vadd.f32 %v664, %v826
    %v891 = vadd.f32 %v665, %v827
    %v892 = vadd.f32 %v666, %v828
    %v893 = vadd.f32 %v667, %v829
    %v894 = vadd.f32 %v668, %v830
    %v895 = vadd.f32 %v669, %v831
    %897 = vset.pattern.permute.xlu0 0
    %898 = vperm.xlu0 %897, %v48
    %v899 = vpop.permute.xlu0 %898
    %902 = vset.pattern.permute.xlu0 0
    %903 = vperm.xlu0 %902, %v49
    %v904 = vpop.permute.xlu0 %903
    %907 = vset.pattern.permute.xlu0 0
    %908 = vperm.xlu0 %907, %v50
    %v909 = vpop.permute.xlu0 %908
    %912 = vset.pattern.permute.xlu0 0
    %913 = vperm.xlu0 %912, %v51
    %v914 = vpop.permute.xlu0 %913
    %v916 = vadd.f32 %v832, %v899
    %v917 = vadd.f32 %v833, %v899
    %v918 = vadd.f32 %v834, %v899
    %v919 = vadd.f32 %v835, %v899
    %v920 = vadd.f32 %v836, %v899
    %v921 = vadd.f32 %v837, %v899
    %v922 = vadd.f32 %v838, %v899
    %v923 = vadd.f32 %v839, %v899
    %v924 = vadd.f32 %v840, %v899
    %v925 = vadd.f32 %v841, %v899
    %v926 = vadd.f32 %v842, %v899
    %v927 = vadd.f32 %v843, %v899
    %v928 = vadd.f32 %v844, %v899
    %v929 = vadd.f32 %v845, %v899
    %v930 = vadd.f32 %v846, %v899
    %v931 = vadd.f32 %v847, %v899
    %v932 = vadd.f32 %v848, %v904
    %v933 = vadd.f32 %v849, %v904
    %v934 = vadd.f32 %v850, %v904
    %v935 = vadd.f32 %v851, %v904
    %v936 = vadd.f32 %v852, %v904
    %v937 = vadd.f32 %v853, %v904
    %v938 = vadd.f32 %v854, %v904
    %v939 = vadd.f32 %v855, %v904
    %v940 = vadd.f32 %v856, %v904
    %v941 = vadd.f32 %v857, %v904
    %v942 = vadd.f32 %v858, %v904
    %v943 = vadd.f32 %v859, %v904
    %v944 = vadd.f32 %v860, %v904
    %v945 = vadd.f32 %v861, %v904
    %v946 = vadd.f32 %v862, %v904
    %v947 = vadd.f32 %v863, %v904
    %v948 = vadd.f32 %v864, %v909
    %v949 = vadd.f32 %v865, %v909
    %v950 = vadd.f32 %v866, %v909
    %v951 = vadd.f32 %v867, %v909
    %v952 = vadd.f32 %v868, %v909
    %v953 = vadd.f32 %v869, %v909
    %v954 = vadd.f32 %v870, %v909
    %v955 = vadd.f32 %v871, %v909
    %v956 = vadd.f32 %v872, %v909
    %v957 = vadd.f32 %v873, %v909
    %v958 = vadd.f32 %v874, %v909
    %v959 = vadd.f32 %v875, %v909
    %v960 = vadd.f32 %v876, %v909
    %v961 = vadd.f32 %v877, %v909
    %v962 = vadd.f32 %v878, %v909
    %v963 = vadd.f32 %v879, %v909
    %v964 = vadd.f32 %v880, %v914
    %v965 = vadd.f32 %v881, %v914
    %v966 = vadd.f32 %v882, %v914
    %v967 = vadd.f32 %v883, %v914
    %v968 = vadd.f32 %v884, %v914
    %v969 = vadd.f32 %v885, %v914
    %v970 = vadd.f32 %v886, %v914
    %v971 = vadd.f32 %v887, %v914
    %v972 = vadd.f32 %v888, %v914
    %v973 = vadd.f32 %v889, %v914
    %v974 = vadd.f32 %v890, %v914
    %v975 = vadd.f32 %v891, %v914
    %v976 = vadd.f32 %v892, %v914
    %v977 = vadd.f32 %v893, %v914
    %v978 = vadd.f32 %v894, %v914
    %v979 = vadd.f32 %v895, %v914
    %v980 = vtanh.pop %v916
    %v981 = vtanh.pop %v917
    %v982 = vtanh.pop %v918
    %v983 = vtanh.pop %v919
    %v984 = vtanh.pop %v920
    %v985 = vtanh.pop %v921
    %v986 = vtanh.pop %v922
    %v987 = vtanh.pop %v923
    %v988 = vtanh.pop %v924
    %v989 = vtanh.pop %v925
    %v990 = vtanh.pop %v926
    %v991 = vtanh.pop %v927
    %v992 = vtanh.pop %v928
    %v993 = vtanh.pop %v929
    %v994 = vtanh.pop %v930
    %v995 = vtanh.pop %v931
    %v996 = vtanh.pop %v932
    %v997 = vtanh.pop %v933
    %v998 = vtanh.pop %v934
    %v999 = vtanh.pop %v935
    %v1000 = vtanh.pop %v936
    %v1001 = vtanh.pop %v937
    %v1002 = vtanh.pop %v938
    %v1003 = vtanh.pop %v939
    %v1004 = vtanh.pop %v940
    %v1005 = vtanh.pop %v941
    %v1006 = vtanh.pop %v942
    %v1007 = vtanh.pop %v943
    %v1008 = vtanh.pop %v944
    %v1009 = vtanh.pop %v945
    %v1010 = vtanh.pop %v946
    %v1011 = vtanh.pop %v947
    %v1012 = vtanh.pop %v948
    %v1013 = vtanh.pop %v949
    %v1014 = vtanh.pop %v950
    %v1015 = vtanh.pop %v951
    %v1016 = vtanh.pop %v952
    %v1017 = vtanh.pop %v953
    %v1018 = vtanh.pop %v954
    %v1019 = vtanh.pop %v955
    %v1020 = vtanh.pop %v956
    %v1021 = vtanh.pop %v957
    %v1022 = vtanh.pop %v958
    %v1023 = vtanh.pop %v959
    %v1024 = vtanh.pop %v960
    %v1025 = vtanh.pop %v961
    %v1026 = vtanh.pop %v962
    %v1027 = vtanh.pop %v963
    %v1028 = vtanh.pop %v964
    %v1029 = vtanh.pop %v965
    %v1030 = vtanh.pop %v966
    %v1031 = vtanh.pop %v967
    %v1032 = vtanh.pop %v968
    %v1033 = vtanh.pop %v969
    %v1034 = vtanh.pop %v970
    %v1035 = vtanh.pop %v971
    %v1036 = vtanh.pop %v972
    %v1037 = vtanh.pop %v973
    %v1038 = vtanh.pop %v974
    %v1039 = vtanh.pop %v975
    %v1040 = vtanh.pop %v976
    %v1041 = vtanh.pop %v977
    %v1042 = vtanh.pop %v978
    %v1043 = vtanh.pop %v979
    %v1044 = vld [vmem:[%s6] sm:$0xff]
    %v1045 = vld [vmem:[%s6 + $0x8] sm:$0xff]
    %v1046 = vld [vmem:[%s6 + $0x10] sm:$0xff]
    %v1047 = vld [vmem:[%s6 + $0x18] sm:$0xff]
    %v1048 = vld [vmem:[%s7] sm:$0xff]
    %v1049 = vld [vmem:[%s7 + $0x8] sm:$0xff]
    %v1050 = vld [vmem:[%s7 + $0x10] sm:$0xff]
    %v1051 = vld [vmem:[%s7 + $0x18] sm:$0xff]
    %1053 = vset.pattern.permute.xlu0 0
    %1054 = vperm.xlu0 %1053, %v1048
    %v1055 = vpop.permute.xlu0 %1054
    %1058 = vset.pattern.permute.xlu0 0
    %1059 = vperm.xlu0 %1058, %v1049
    %v1060 = vpop.permute.xlu0 %1059
    %1063 = vset.pattern.permute.xlu0 0
    %1064 = vperm.xlu0 %1063, %v1050
    %v1065 = vpop.permute.xlu0 %1064
    %1068 = vset.pattern.permute.xlu0 0
    %1069 = vperm.xlu0 %1068, %v1051
    %v1070 = vpop.permute.xlu0 %1069
    %vm1072 = vcmask 261120
    %v1074 = vsel %vm1072, %v1044, 0
    %v1077 = vsel %vm1072, %v1045, 0
    %v1080 = vsel %vm1072, %v1046, 0
    %v1083 = vsel %vm1072, %v1047, 0
    %1085 = vmatprep.subr.mxu0 %v981
    %1086 = vmatpush1.msra.mxu0 %v980
    %1087 = vmatprep.subr.mxu0 %v997
    %1088 = vmatpush1.msra.mxu0 %v996
    %1089 = vmatprep.subr.mxu0 %v1013
    %1090 = vmatpush1.msra.mxu0 %v1012
    %1091 = vmatprep.subr.mxu0 %v1029
    %1092 = vmatpush1.msra.mxu0 %v1028
    %1093 = vmatprep.subr.mxu0 0.0
    %1094 = vmatpush1.msra.mxu0 0.0
    %1095 = vmatprep.subr.mxu0 0.0
    %1096 = vmatpush1.msra.mxu0 0.0
    %1097 = vmatprep.subr.mxu0 0.0
    %1098 = vmatpush1.msra.mxu0 0.0
    %1099 = vmatprep.subr.mxu0 0.0
    %1100 = vmatpush1.msra.mxu0 0.0
    %1101 = vmatprep.subr.mxu0 0.0
    %1102 = vmatpush1.msra.mxu0 0.0
    %1103 = vmatprep.subr.mxu0 0.0
    %1104 = vmatpush1.msra.mxu0 0.0
    %1105 = vmatprep.subr.mxu0 0.0
    %1106 = vmatpush1.msra.mxu0 0.0
    %1107 = vmatprep.subr.mxu0 0.0
    %1108 = vmatpush1.msra.mxu0 0.0
    %1109 = vmatprep.subr.mxu0 0.0
    %1110 = vmatpush1.msra.mxu0 0.0
    %1111 = vmatprep.subr.mxu0 0.0
    %1112 = vmatpush1.msra.mxu0 0.0
    %1113 = vmatprep.subr.mxu0 0.0
    %1114 = vmatpush1.msra.mxu0 0.0
    %1115 = vmatprep.subr.mxu0 0.0
    %1116 = vmatpush1.msra.mxu0 0.0
    %1117 = vmatprep.subr.mxu0 0.0
    %1118 = vmatpush1.msra.mxu0 0.0
    %1119 = vmatprep.subr.mxu0 0.0
    %1120 = vmatpush1.msra.mxu0 0.0
    %1121 = vmatprep.subr.mxu0 0.0
    %1122 = vmatpush1.msra.mxu0 0.0
    %1123 = vmatprep.subr.mxu0 0.0
    %1124 = vmatpush1.msra.mxu0 0.0
    %1125 = vmatprep.subr.mxu0 0.0
    %1126 = vmatpush1.msra.mxu0 0.0
    %1127 = vmatprep.subr.mxu0 0.0
    %1128 = vmatpush1.msra.mxu0 0.0
    %1129 = vmatprep.subr.mxu0 0.0
    %1130 = vmatpush1.msra.mxu0 0.0
    %1131 = vmatprep.subr.mxu0 0.0
    %1132 = vmatpush1.msra.mxu0 0.0
    %1133 = vmatprep.subr.mxu0 0.0
    %1134 = vmatpush1.msra.mxu0 0.0
    %1135 = vmatprep.subr.mxu0 0.0
    %1136 = vmatpush1.msra.mxu0 0.0
    %1137 = vmatprep.subr.mxu0 0.0
    %1138 = vmatpush1.msra.mxu0 0.0
    %1139 = vmatprep.subr.mxu0 0.0
    %1140 = vmatpush1.msra.mxu0 0.0
    %1141 = vmatprep.subr.mxu0 0.0
    %1142 = vmatpush1.msra.mxu0 0.0
    %1143 = vmatprep.subr.mxu0 0.0
    %1144 = vmatpush1.msra.mxu0 0.0
    %1145 = vmatprep.subr.mxu0 0.0
    %1146 = vmatpush1.msra.mxu0 0.0
    %1147 = vmatprep.subr.mxu0 0.0
    %1148 = vmatpush1.msra.mxu0 0.0
    %1149 = vmatprep.mubr.f32.mxu0 0.0
    %1150 = vmatmul.mubr.f32.gmra.mrb[0].mxu0 %v1074
    %v1151 = vpop.f32.mrb[0].mxu0
    %v1152 = vadd.f32 %v1055, %v1151
    %v1153 = vpop.f32.mrb[0].mxu0
    %v1154 = vadd.f32 %v1055, %v1153
    %1155 = vmatprep.mubr.f32.mxu0 0.0
    %1156 = vmatmul.mubr.f32.gmra.mrb[0].mxu0 %v1077
    %v1157 = vpop.f32.mrb[0].mxu0
    %v1158 = vadd.f32 %v1060, %v1157
    %v1159 = vpop.f32.mrb[0].mxu0
    %v1160 = vadd.f32 %v1060, %v1159
    %1161 = vmatprep.mubr.f32.mxu0 0.0
    %1162 = vmatmul.mubr.f32.gmra.mrb[0].mxu0 %v1080
    %v1163 = vpop.f32.mrb[0].mxu0
    %v1164 = vadd.f32 %v1065, %v1163
    %v1165 = vpop.f32.mrb[0].mxu0
    %v1166 = vadd.f32 %v1065, %v1165
    %1167 = vmatprep.mubr.f32.mxu0 0.0
    %1168 = vmatmul.mubr.f32.gmra.mrb[0].mxu0 %v1083
    %v1169 = vpop.f32.mrb[0].mxu0
    %v1170 = vadd.f32 %v1070, %v1169
    %v1171 = vpop.f32.mrb[0].mxu0
    %v1172 = vadd.f32 %v1070, %v1171
    %1173 = vdwg.mxu0
    %1174 = vmatprep.subr.mxu0 %v983
    %1175 = vmatpush1.msra.mxu0 %v982
    %1176 = vmatprep.subr.mxu0 %v999
    %1177 = vmatpush1.msra.mxu0 %v998
    %1178 = vmatprep.subr.mxu0 %v1015
    %1179 = vmatpush1.msra.mxu0 %v1014
    %1180 = vmatprep.subr.mxu0 %v1031
    %1181 = vmatpush1.msra.mxu0 %v1030
    %1182 = vmatprep.subr.mxu0 0.0
    %1183 = vmatpush1.msra.mxu0 0.0
    %1184 = vmatprep.subr.mxu0 0.0
    %1185 = vmatpush1.msra.mxu0 0.0
    %1186 = vmatprep.subr.mxu0 0.0
    %1187 = vmatpush1.msra.mxu0 0.0
    %1188 = vmatprep.subr.mxu0 0.0
    %1189 = vmatpush1.msra.mxu0 0.0
    %1190 = vmatprep.subr.mxu0 0.0
    %1191 = vmatpush1.msra.mxu0 0.0
    %1192 = vmatprep.subr.mxu0 0.0
    %1193 = vmatpush1.msra.mxu0 0.0
    %1194 = vmatprep.subr.mxu0 0.0
    %1195 = vmatpush1.msra.mxu0 0.0
    %1196 = vmatprep.subr.mxu0 0.0
    %1197 = vmatpush1.msra.mxu0 0.0
    %1198 = vmatprep.subr.mxu0 0.0
    %1199 = vmatpush1.msra.mxu0 0.0
    %1200 = vmatprep.subr.mxu0 0.0
    %1201 = vmatpush1.msra.mxu0 0.0
    %1202 = vmatprep.subr.mxu0 0.0
    %1203 = vmatpush1.msra.mxu0 0.0
    %1204 = vmatprep.subr.mxu0 0.0
    %1205 = vmatpush1.msra.mxu0 0.0
    %1206 = vmatprep.subr.mxu0 0.0
    %1207 = vmatpush1.msra.mxu0 0.0
    %1208 = vmatprep.subr.mxu0 0.0
    %1209 = vmatpush1.msra.mxu0 0.0
    %1210 = vmatprep.subr.mxu0 0.0
    %1211 = vmatpush1.msra.mxu0 0.0
    %1212 = vmatprep.subr.mxu0 0.0
    %1213 = vmatpush1.msra.mxu0 0.0
    %1214 = vmatprep.subr.mxu0 0.0
    %1215 = vmatpush1.msra.mxu0 0.0
    %1216 = vmatprep.subr.mxu0 0.0
    %1217 = vmatpush1.msra.mxu0 0.0
    %1218 = vmatprep.subr.mxu0 0.0
    %1219 = vmatpush1.msra.mxu0 0.0
    %1220 = vmatprep.subr.mxu0 0.0
    %1221 = vmatpush1.msra.mxu0 0.0
    %1222 = vmatprep.subr.mxu0 0.0
    %1223 = vmatpush1.msra.mxu0 0.0
    %1224 = vmatprep.subr.mxu0 0.0
    %1225 = vmatpush1.msra.mxu0 0.0
    %1226 = vmatprep.subr.mxu0 0.0
    %1227 = vmatpush1.msra.mxu0 0.0
    %1228 = vmatprep.subr.mxu0 0.0
    %1229 = vmatpush1.msra.mxu0 0.0
    %1230 = vmatprep.subr.mxu0 0.0
    %1231 = vmatpush1.msra.mxu0 0.0
    %1232 = vmatprep.subr.mxu0 0.0
    %1233 = vmatpush1.msra.mxu0 0.0
    %1234 = vmatprep.subr.mxu0 0.0
    %1235 = vmatpush1.msra.mxu0 0.0
    %1236 = vmatprep.subr.mxu0 0.0
    %1237 = vmatpush1.msra.mxu0 0.0
    %1238 = vmatprep.mubr.f32.mxu0 0.0
    %1239 = vmatmul.mubr.f32.gmra.mrb[0].mxu0 %v1074
    %v1240 = vpop.f32.mrb[0].mxu0
    %v1241 = vadd.f32 %v1055, %v1240
    %v1242 = vpop.f32.mrb[0].mxu0
    %v1243 = vadd.f32 %v1055, %v1242
    %1244 = vmatprep.mubr.f32.mxu0 0.0
    %1245 = vmatmul.mubr.f32.gmra.mrb[0].mxu0 %v1077
    %v1246 = vpop.f32.mrb[0].mxu0
    %v1247 = vadd.f32 %v1060, %v1246
    %v1248 = vpop.f32.mrb[0].mxu0
    %v1249 = vadd.f32 %v1060, %v1248
    %1250 = vmatprep.mubr.f32.mxu0 0.0
    %1251 = vmatmul.mubr.f32.gmra.mrb[0].mxu0 %v1080
    %v1252 = vpop.f32.mrb[0].mxu0
    %v1253 = vadd.f32 %v1065, %v1252
    %v1254 = vpop.f32.mrb[0].mxu0
    %v1255 = vadd.f32 %v1065, %v1254
    %1256 = vmatprep.mubr.f32.mxu0 0.0
    %1257 = vmatmul.mubr.f32.gmra.mrb[0].mxu0 %v1083
    %v1258 = vpop.f32.mrb[0].mxu0
    %v1259 = vadd.f32 %v1070, %v1258
    %v1260 = vpop.f32.mrb[0].mxu0
    %v1261 = vadd.f32 %v1070, %v1260
    %1262 = vdwg.mxu0
    %1263 = vmatprep.subr.mxu0 %v985
    %1264 = vmatpush1.msra.mxu0 %v984
    %1265 = vmatprep.subr.mxu0 %v1001
    %1266 = vmatpush1.msra.mxu0 %v1000
    %1267 = vmatprep.subr.mxu0 %v1017
    %1268 = vmatpush1.msra.mxu0 %v1016
    %1269 = vmatprep.subr.mxu0 %v1033
    %1270 = vmatpush1.msra.mxu0 %v1032
    %1271 = vmatprep.subr.mxu0 0.0
    %1272 = vmatpush1.msra.mxu0 0.0
    %1273 = vmatprep.subr.mxu0 0.0
    %1274 = vmatpush1.msra.mxu0 0.0
    %1275 = vmatprep.subr.mxu0 0.0
    %1276 = vmatpush1.msra.mxu0 0.0
    %1277 = vmatprep.subr.mxu0 0.0
    %1278 = vmatpush1.msra.mxu0 0.0
    %1279 = vmatprep.subr.mxu0 0.0
    %1280 = vmatpush1.msra.mxu0 0.0
    %1281 = vmatprep.subr.mxu0 0.0
    %1282 = vmatpush1.msra.mxu0 0.0
    %1283 = vmatprep.subr.mxu0 0.0
    %1284 = vmatpush1.msra.mxu0 0.0
    %1285 = vmatprep.subr.mxu0 0.0
    %1286 = vmatpush1.msra.mxu0 0.0
    %1287 = vmatprep.subr.mxu0 0.0
    %1288 = vmatpush1.msra.mxu0 0.0
    %1289 = vmatprep.subr.mxu0 0.0
    %1290 = vmatpush1.msra.mxu0 0.0
    %1291 = vmatprep.subr.mxu0 0.0
    %1292 = vmatpush1.msra.mxu0 0.0
    %1293 = vmatprep.subr.mxu0 0.0
    %1294 = vmatpush1.msra.mxu0 0.0
    %1295 = vmatprep.subr.mxu0 0.0
    %1296 = vmatpush1.msra.mxu0 0.0
    %1297 = vmatprep.subr.mxu0 0.0
    %1298 = vmatpush1.msra.mxu0 0.0
    %1299 = vmatprep.subr.mxu0 0.0
    %1300 = vmatpush1.msra.mxu0 0.0
    %1301 = vmatprep.subr.mxu0 0.0
    %1302 = vmatpush1.msra.mxu0 0.0
    %1303 = vmatprep.subr.mxu0 0.0
    %1304 = vmatpush1.msra.mxu0 0.0
    %1305 = vmatprep.subr.mxu0 0.0
    %1306 = vmatpush1.msra.mxu0 0.0
    %1307 = vmatprep.subr.mxu0 0.0
    %1308 = vmatpush1.msra.mxu0 0.0
    %1309 = vmatprep.subr.mxu0 0.0
    %1310 = vmatpush1.msra.mxu0 0.0
    %1311 = vmatprep.subr.mxu0 0.0
    %1312 = vmatpush1.msra.mxu0 0.0
    %1313 = vmatprep.subr.mxu0 0.0
    %1314 = vmatpush1.msra.mxu0 0.0
    %1315 = vmatprep.subr.mxu0 0.0
    %1316 = vmatpush1.msra.mxu0 0.0
    %1317 = vmatprep.subr.mxu0 0.0
    %1318 = vmatpush1.msra.mxu0 0.0
    %1319 = vmatprep.subr.mxu0 0.0
    %1320 = vmatpush1.msra.mxu0 0.0
    %1321 = vmatprep.subr.mxu0 0.0
    %1322 = vmatpush1.msra.mxu0 0.0
    %1323 = vmatprep.subr.mxu0 0.0
    %1324 = vmatpush1.msra.mxu0 0.0
    %1325 = vmatprep.subr.mxu0 0.0
    %1326 = vmatpush1.msra.mxu0 0.0
    %1327 = vmatprep.mubr.f32.mxu0 0.0
    %1328 = vmatmul.mubr.f32.gmra.mrb[0].mxu0 %v1074
    %v1329 = vpop.f32.mrb[0].mxu0
    %v1330 = vadd.f32 %v1055, %v1329
    %v1331 = vpop.f32.mrb[0].mxu0
    %v1332 = vadd.f32 %v1055, %v1331
    %1333 = vmatprep.mubr.f32.mxu0 0.0
    %1334 = vmatmul.mubr.f32.gmra.mrb[0].mxu0 %v1077
    %v1335 = vpop.f32.mrb[0].mxu0
    %v1336 = vadd.f32 %v1060, %v1335
    %v1337 = vpop.f32.mrb[0].mxu0
    %v1338 = vadd.f32 %v1060, %v1337
    %1339 = vmatprep.mubr.f32.mxu0 0.0
    %1340 = vmatmul.mubr.f32.gmra.mrb[0].mxu0 %v1080
    %v1341 = vpop.f32.mrb[0].mxu0
    %v1342 = vadd.f32 %v1065, %v1341
    %v1343 = vpop.f32.mrb[0].mxu0
    %v1344 = vadd.f32 %v1065, %v1343
    %1345 = vmatprep.mubr.f32.mxu0 0.0
    %1346 = vmatmul.mubr.f32.gmra.mrb[0].mxu0 %v1083
    %v1347 = vpop.f32.mrb[0].mxu0
    %v1348 = vadd.f32 %v1070, %v1347
    %v1349 = vpop.f32.mrb[0].mxu0
    %v1350 = vadd.f32 %v1070, %v1349
    %1351 = vdwg.mxu0
    %1352 = vmatprep.subr.mxu0 %v987
    %1353 = vmatpush1.msra.mxu0 %v986
    %1354 = vmatprep.subr.mxu0 %v1003
    %1355 = vmatpush1.msra.mxu0 %v1002
    %1356 = vmatprep.subr.mxu0 %v1019
    %1357 = vmatpush1.msra.mxu0 %v1018
    %1358 = vmatprep.subr.mxu0 %v1035
    %1359 = vmatpush1.msra.mxu0 %v1034
    %1360 = vmatprep.subr.mxu0 0.0
    %1361 = vmatpush1.msra.mxu0 0.0
    %1362 = vmatprep.subr.mxu0 0.0
    %1363 = vmatpush1.msra.mxu0 0.0
    %1364 = vmatprep.subr.mxu0 0.0
    %1365 = vmatpush1.msra.mxu0 0.0
    %1366 = vmatprep.subr.mxu0 0.0
    %1367 = vmatpush1.msra.mxu0 0.0
    %1368 = vmatprep.subr.mxu0 0.0
    %1369 = vmatpush1.msra.mxu0 0.0
    %1370 = vmatprep.subr.mxu0 0.0
    %1371 = vmatpush1.msra.mxu0 0.0
    %1372 = vmatprep.subr.mxu0 0.0
    %1373 = vmatpush1.msra.mxu0 0.0
    %1374 = vmatprep.subr.mxu0 0.0
    %1375 = vmatpush1.msra.mxu0 0.0
    %1376 = vmatprep.subr.mxu0 0.0
    %1377 = vmatpush1.msra.mxu0 0.0
    %1378 = vmatprep.subr.mxu0 0.0
    %1379 = vmatpush1.msra.mxu0 0.0
    %1380 = vmatprep.subr.mxu0 0.0
    %1381 = vmatpush1.msra.mxu0 0.0
    %1382 = vmatprep.subr.mxu0 0.0
    %1383 = vmatpush1.msra.mxu0 0.0
    %1384 = vmatprep.subr.mxu0 0.0
    %1385 = vmatpush1.msra.mxu0 0.0
    %1386 = vmatprep.subr.mxu0 0.0
    %1387 = vmatpush1.msra.mxu0 0.0
    %1388 = vmatprep.subr.mxu0 0.0
    %1389 = vmatpush1.msra.mxu0 0.0
    %1390 = vmatprep.subr.mxu0 0.0
    %1391 = vmatpush1.msra.mxu0 0.0
    %1392 = vmatprep.subr.mxu0 0.0
    %1393 = vmatpush1.msra.mxu0 0.0
    %1394 = vmatprep.subr.mxu0 0.0
    %1395 = vmatpush1.msra.mxu0 0.0
    %1396 = vmatprep.subr.mxu0 0.0
    %1397 = vmatpush1.msra.mxu0 0.0
    %1398 = vmatprep.subr.mxu0 0.0
    %1399 = vmatpush1.msra.mxu0 0.0
    %1400 = vmatprep.subr.mxu0 0.0
    %1401 = vmatpush1.msra.mxu0 0.0
    %1402 = vmatprep.subr.mxu0 0.0
    %1403 = vmatpush1.msra.mxu0 0.0
    %1404 = vmatprep.subr.mxu0 0.0
    %1405 = vmatpush1.msra.mxu0 0.0
    %1406 = vmatprep.subr.mxu0 0.0
    %1407 = vmatpush1.msra.mxu0 0.0
    %1408 = vmatprep.subr.mxu0 0.0
    %1409 = vmatpush1.msra.mxu0 0.0
    %1410 = vmatprep.subr.mxu0 0.0
    %1411 = vmatpush1.msra.mxu0 0.0
    %1412 = vmatprep.subr.mxu0 0.0
    %1413 = vmatpush1.msra.mxu0 0.0
    %1414 = vmatprep.subr.mxu0 0.0
    %1415 = vmatpush1.msra.mxu0 0.0
    %1416 = vmatprep.mubr.f32.mxu0 0.0
    %1417 = vmatmul.mubr.f32.gmra.mrb[0].mxu0 %v1074
    %v1418 = vpop.f32.mrb[0].mxu0
    %v1419 = vadd.f32 %v1055, %v1418
    %v1420 = vpop.f32.mrb[0].mxu0
    %v1421 = vadd.f32 %v1055, %v1420
    %1422 = vmatprep.mubr.f32.mxu0 0.0
    %1423 = vmatmul.mubr.f32.gmra.mrb[0].mxu0 %v1077
    %v1424 = vpop.f32.mrb[0].mxu0
    %v1425 = vadd.f32 %v1060, %v1424
    %v1426 = vpop.f32.mrb[0].mxu0
    %v1427 = vadd.f32 %v1060, %v1426
    %1428 = vmatprep.mubr.f32.mxu0 0.0
    %1429 = vmatmul.mubr.f32.gmra.mrb[0].mxu0 %v1080
    %v1430 = vpop.f32.mrb[0].mxu0
    %v1431 = vadd.f32 %v1065, %v1430
    %v1432 = vpop.f32.mrb[0].mxu0
    %v1433 = vadd.f32 %v1065, %v1432
    %1434 = vmatprep.mubr.f32.mxu0 0.0
    %1435 = vmatmul.mubr.f32.gmra.mrb[0].mxu0 %v1083
    %v1436 = vpop.f32.mrb[0].mxu0
    %v1437 = vadd.f32 %v1070, %v1436
    %v1438 = vpop.f32.mrb[0].mxu0
    %v1439 = vadd.f32 %v1070, %v1438
    %1440 = vdwg.mxu0
    %1441 = vmatprep.subr.mxu0 %v989
    %1442 = vmatpush1.msra.mxu0 %v988
    %1443 = vmatprep.subr.mxu0 %v1005
    %1444 = vmatpush1.msra.mxu0 %v1004
    %1445 = vmatprep.subr.mxu0 %v1021
    %1446 = vmatpush1.msra.mxu0 %v1020
    %1447 = vmatprep.subr.mxu0 %v1037
    %1448 = vmatpush1.msra.mxu0 %v1036
    %1449 = vmatprep.subr.mxu0 0.0
    %1450 = vmatpush1.msra.mxu0 0.0
    %1451 = vmatprep.subr.mxu0 0.0
    %1452 = vmatpush1.msra.mxu0 0.0
    %1453 = vmatprep.subr.mxu0 0.0
    %1454 = vmatpush1.msra.mxu0 0.0
    %1455 = vmatprep.subr.mxu0 0.0
    %1456 = vmatpush1.msra.mxu0 0.0
    %1457 = vmatprep.subr.mxu0 0.0
    %1458 = vmatpush1.msra.mxu0 0.0
    %1459 = vmatprep.subr.mxu0 0.0
    %1460 = vmatpush1.msra.mxu0 0.0
    %1461 = vmatprep.subr.mxu0 0.0
    %1462 = vmatpush1.msra.mxu0 0.0
    %1463 = vmatprep.subr.mxu0 0.0
    %1464 = vmatpush1.msra.mxu0 0.0
    %1465 = vmatprep.subr.mxu0 0.0
    %1466 = vmatpush1.msra.mxu0 0.0
    %1467 = vmatprep.subr.mxu0 0.0
    %1468 = vmatpush1.msra.mxu0 0.0
    %1469 = vmatprep.subr.mxu0 0.0
    %1470 = vmatpush1.msra.mxu0 0.0
    %1471 = vmatprep.subr.mxu0 0.0
    %1472 = vmatpush1.msra.mxu0 0.0
    %1473 = vmatprep.subr.mxu0 0.0
    %1474 = vmatpush1.msra.mxu0 0.0
    %1475 = vmatprep.subr.mxu0 0.0
    %1476 = vmatpush1.msra.mxu0 0.0
    %1477 = vmatprep.subr.mxu0 0.0
    %1478 = vmatpush1.msra.mxu0 0.0
    %1479 = vmatprep.subr.mxu0 0.0
    %1480 = vmatpush1.msra.mxu0 0.0
    %1481 = vmatprep.subr.mxu0 0.0
    %1482 = vmatpush1.msra.mxu0 0.0
    %1483 = vmatprep.subr.mxu0 0.0
    %1484 = vmatpush1.msra.mxu0 0.0
    %1485 = vmatprep.subr.mxu0 0.0
    %1486 = vmatpush1.msra.mxu0 0.0
    %1487 = vmatprep.subr.mxu0 0.0
    %1488 = vmatpush1.msra.mxu0 0.0
    %1489 = vmatprep.subr.mxu0 0.0
    %1490 = vmatpush1.msra.mxu0 0.0
    %1491 = vmatprep.subr.mxu0 0.0
    %1492 = vmatpush1.msra.mxu0 0.0
    %1493 = vmatprep.subr.mxu0 0.0
    %1494 = vmatpush1.msra.mxu0 0.0
    %1495 = vmatprep.subr.mxu0 0.0
    %1496 = vmatpush1.msra.mxu0 0.0
    %1497 = vmatprep.subr.mxu0 0.0
    %1498 = vmatpush1.msra.mxu0 0.0
    %1499 = vmatprep.subr.mxu0 0.0
    %1500 = vmatpush1.msra.mxu0 0.0
    %1501 = vmatprep.subr.mxu0 0.0
    %1502 = vmatpush1.msra.mxu0 0.0
    %1503 = vmatprep.subr.mxu0 0.0
    %1504 = vmatpush1.msra.mxu0 0.0
    %1505 = vmatprep.mubr.f32.mxu0 0.0
    %1506 = vmatmul.mubr.f32.gmra.mrb[0].mxu0 %v1074
    %v1507 = vpop.f32.mrb[0].mxu0
    %v1508 = vadd.f32 %v1055, %v1507
    %v1509 = vpop.f32.mrb[0].mxu0
    %v1510 = vadd.f32 %v1055, %v1509
    %1511 = vmatprep.mubr.f32.mxu0 0.0
    %1512 = vmatmul.mubr.f32.gmra.mrb[0].mxu0 %v1077
    %v1513 = vpop.f32.mrb[0].mxu0
    %v1514 = vadd.f32 %v1060, %v1513
    %v1515 = vpop.f32.mrb[0].mxu0
    %v1516 = vadd.f32 %v1060, %v1515
    %1517 = vmatprep.mubr.f32.mxu0 0.0
    %1518 = vmatmul.mubr.f32.gmra.mrb[0].mxu0 %v1080
    %v1519 = vpop.f32.mrb[0].mxu0
    %v1520 = vadd.f32 %v1065, %v1519
    %v1521 = vpop.f32.mrb[0].mxu0
    %v1522 = vadd.f32 %v1065, %v1521
    %1523 = vmatprep.mubr.f32.mxu0 0.0
    %1524 = vmatmul.mubr.f32.gmra.mrb[0].mxu0 %v1083
    %v1525 = vpop.f32.mrb[0].mxu0
    %v1526 = vadd.f32 %v1070, %v1525
    %v1527 = vpop.f32.mrb[0].mxu0
    %v1528 = vadd.f32 %v1070, %v1527
    %1529 = vdwg.mxu0
    %1530 = vmatprep.subr.mxu0 %v991
    %1531 = vmatpush1.msra.mxu0 %v990
    %1532 = vmatprep.subr.mxu0 %v1007
    %1533 = vmatpush1.msra.mxu0 %v1006
    %1534 = vmatprep.subr.mxu0 %v1023
    %1535 = vmatpush1.msra.mxu0 %v1022
    %1536 = vmatprep.subr.mxu0 %v1039
    %1537 = vmatpush1.msra.mxu0 %v1038
    %1538 = vmatprep.subr.mxu0 0.0
    %1539 = vmatpush1.msra.mxu0 0.0
    %1540 = vmatprep.subr.mxu0 0.0
    %1541 = vmatpush1.msra.mxu0 0.0
    %1542 = vmatprep.subr.mxu0 0.0
    %1543 = vmatpush1.msra.mxu0 0.0
    %1544 = vmatprep.subr.mxu0 0.0
    %1545 = vmatpush1.msra.mxu0 0.0
    %1546 = vmatprep.subr.mxu0 0.0
    %1547 = vmatpush1.msra.mxu0 0.0
    %1548 = vmatprep.subr.mxu0 0.0
    %1549 = vmatpush1.msra.mxu0 0.0
    %1550 = vmatprep.subr.mxu0 0.0
    %1551 = vmatpush1.msra.mxu0 0.0
    %1552 = vmatprep.subr.mxu0 0.0
    %1553 = vmatpush1.msra.mxu0 0.0
    %1554 = vmatprep.subr.mxu0 0.0
    %1555 = vmatpush1.msra.mxu0 0.0
    %1556 = vmatprep.subr.mxu0 0.0
    %1557 = vmatpush1.msra.mxu0 0.0
    %1558 = vmatprep.subr.mxu0 0.0
    %1559 = vmatpush1.msra.mxu0 0.0
    %1560 = vmatprep.subr.mxu0 0.0
    %1561 = vmatpush1.msra.mxu0 0.0
    %1562 = vmatprep.subr.mxu0 0.0
    %1563 = vmatpush1.msra.mxu0 0.0
    %1564 = vmatprep.subr.mxu0 0.0
    %1565 = vmatpush1.msra.mxu0 0.0
    %1566 = vmatprep.subr.mxu0 0.0
    %1567 = vmatpush1.msra.mxu0 0.0
    %1568 = vmatprep.subr.mxu0 0.0
    %1569 = vmatpush1.msra.mxu0 0.0
    %1570 = vmatprep.subr.mxu0 0.0
    %1571 = vmatpush1.msra.mxu0 0.0
    %1572 = vmatprep.subr.mxu0 0.0
    %1573 = vmatpush1.msra.mxu0 0.0
    %1574 = vmatprep.subr.mxu0 0.0
    %1575 = vmatpush1.msra.mxu0 0.0
    %1576 = vmatprep.subr.mxu0 0.0
    %1577 = vmatpush1.msra.mxu0 0.0
    %1578 = vmatprep.subr.mxu0 0.0
    %1579 = vmatpush1.msra.mxu0 0.0
    %1580 = vmatprep.subr.mxu0 0.0
    %1581 = vmatpush1.msra.mxu0 0.0
    %1582 = vmatprep.subr.mxu0 0.0
    %1583 = vmatpush1.msra.mxu0 0.0
    %1584 = vmatprep.subr.mxu0 0.0
    %1585 = vmatpush1.msra.mxu0 0.0
    %1586 = vmatprep.subr.mxu0 0.0
    %1587 = vmatpush1.msra.mxu0 0.0
    %1588 = vmatprep.subr.mxu0 0.0
    %1589 = vmatpush1.msra.mxu0 0.0
    %1590 = vmatprep.subr.mxu0 0.0
    %1591 = vmatpush1.msra.mxu0 0.0
    %1592 = vmatprep.subr.mxu0 0.0
    %1593 = vmatpush1.msra.mxu0 0.0
    %1594 = vmatprep.mubr.f32.mxu0 0.0
    %1595 = vmatmul.mubr.f32.gmra.mrb[0].mxu0 %v1074
    %v1596 = vpop.f32.mrb[0].mxu0
    %v1597 = vadd.f32 %v1055, %v1596
    %v1598 = vpop.f32.mrb[0].mxu0
    %v1599 = vadd.f32 %v1055, %v1598
    %1600 = vmatprep.mubr.f32.mxu0 0.0
    %1601 = vmatmul.mubr.f32.gmra.mrb[0].mxu0 %v1077
    %v1602 = vpop.f32.mrb[0].mxu0
    %v1603 = vadd.f32 %v1060, %v1602
    %v1604 = vpop.f32.mrb[0].mxu0
    %v1605 = vadd.f32 %v1060, %v1604
    %1606 = vmatprep.mubr.f32.mxu0 0.0
    %1607 = vmatmul.mubr.f32.gmra.mrb[0].mxu0 %v1080
    %v1608 = vpop.f32.mrb[0].mxu0
    %v1609 = vadd.f32 %v1065, %v1608
    %v1610 = vpop.f32.mrb[0].mxu0
    %v1611 = vadd.f32 %v1065, %v1610
    %1612 = vmatprep.mubr.f32.mxu0 0.0
    %1613 = vmatmul.mubr.f32.gmra.mrb[0].mxu0 %v1083
    %v1614 = vpop.f32.mrb[0].mxu0
    %v1615 = vadd.f32 %v1070, %v1614
    %v1616 = vpop.f32.mrb[0].mxu0
    %v1617 = vadd.f32 %v1070, %v1616
    %1618 = vdwg.mxu0
    %1619 = vmatprep.subr.mxu0 %v993
    %1620 = vmatpush1.msra.mxu0 %v992
    %1621 = vmatprep.subr.mxu0 %v1009
    %1622 = vmatpush1.msra.mxu0 %v1008
    %1623 = vmatprep.subr.mxu0 %v1025
    %1624 = vmatpush1.msra.mxu0 %v1024
    %1625 = vmatprep.subr.mxu0 %v1041
    %1626 = vmatpush1.msra.mxu0 %v1040
    %1627 = vmatprep.subr.mxu0 0.0
    %1628 = vmatpush1.msra.mxu0 0.0
    %1629 = vmatprep.subr.mxu0 0.0
    %1630 = vmatpush1.msra.mxu0 0.0
    %1631 = vmatprep.subr.mxu0 0.0
    %1632 = vmatpush1.msra.mxu0 0.0
    %1633 = vmatprep.subr.mxu0 0.0
    %1634 = vmatpush1.msra.mxu0 0.0
    %1635 = vmatprep.subr.mxu0 0.0
    %1636 = vmatpush1.msra.mxu0 0.0
    %1637 = vmatprep.subr.mxu0 0.0
    %1638 = vmatpush1.msra.mxu0 0.0
    %1639 = vmatprep.subr.mxu0 0.0
    %1640 = vmatpush1.msra.mxu0 0.0
    %1641 = vmatprep.subr.mxu0 0.0
    %1642 = vmatpush1.msra.mxu0 0.0
    %1643 = vmatprep.subr.mxu0 0.0
    %1644 = vmatpush1.msra.mxu0 0.0
    %1645 = vmatprep.subr.mxu0 0.0
    %1646 = vmatpush1.msra.mxu0 0.0
    %1647 = vmatprep.subr.mxu0 0.0
    %1648 = vmatpush1.msra.mxu0 0.0
    %1649 = vmatprep.subr.mxu0 0.0
    %1650 = vmatpush1.msra.mxu0 0.0
    %1651 = vmatprep.subr.mxu0 0.0
    %1652 = vmatpush1.msra.mxu0 0.0
    %1653 = vmatprep.subr.mxu0 0.0
    %1654 = vmatpush1.msra.mxu0 0.0
    %1655 = vmatprep.subr.mxu0 0.0
    %1656 = vmatpush1.msra.mxu0 0.0
    %1657 = vmatprep.subr.mxu0 0.0
    %1658 = vmatpush1.msra.mxu0 0.0
    %1659 = vmatprep.subr.mxu0 0.0
    %1660 = vmatpush1.msra.mxu0 0.0
    %1661 = vmatprep.subr.mxu0 0.0
    %1662 = vmatpush1.msra.mxu0 0.0
    %1663 = vmatprep.subr.mxu0 0.0
    %1664 = vmatpush1.msra.mxu0 0.0
    %1665 = vmatprep.subr.mxu0 0.0
    %1666 = vmatpush1.msra.mxu0 0.0
    %1667 = vmatprep.subr.mxu0 0.0
    %1668 = vmatpush1.msra.mxu0 0.0
    %1669 = vmatprep.subr.mxu0 0.0
    %1670 = vmatpush1.msra.mxu0 0.0
    %1671 = vmatprep.subr.mxu0 0.0
    %1672 = vmatpush1.msra.mxu0 0.0
    %1673 = vmatprep.subr.mxu0 0.0
    %1674 = vmatpush1.msra.mxu0 0.0
    %1675 = vmatprep.subr.mxu0 0.0
    %1676 = vmatpush1.msra.mxu0 0.0
    %1677 = vmatprep.subr.mxu0 0.0
    %1678 = vmatpush1.msra.mxu0 0.0
    %1679 = vmatprep.subr.mxu0 0.0
    %1680 = vmatpush1.msra.mxu0 0.0
    %1681 = vmatprep.subr.mxu0 0.0
    %1682 = vmatpush1.msra.mxu0 0.0
    %1683 = vmatprep.mubr.f32.mxu0 0.0
    %1684 = vmatmul.mubr.f32.gmra.mrb[0].mxu0 %v1074
    %v1685 = vpop.f32.mrb[0].mxu0
    %v1686 = vadd.f32 %v1055, %v1685
    %v1687 = vpop.f32.mrb[0].mxu0
    %v1688 = vadd.f32 %v1055, %v1687
    %1689 = vmatprep.mubr.f32.mxu0 0.0
    %1690 = vmatmul.mubr.f32.gmra.mrb[0].mxu0 %v1077
    %v1691 = vpop.f32.mrb[0].mxu0
    %v1692 = vadd.f32 %v1060, %v1691
    %v1693 = vpop.f32.mrb[0].mxu0
    %v1694 = vadd.f32 %v1060, %v1693
    %1695 = vmatprep.mubr.f32.mxu0 0.0
    %1696 = vmatmul.mubr.f32.gmra.mrb[0].mxu0 %v1080
    %v1697 = vpop.f32.mrb[0].mxu0
    %v1698 = vadd.f32 %v1065, %v1697
    %v1699 = vpop.f32.mrb[0].mxu0
    %v1700 = vadd.f32 %v1065, %v1699
    %1701 = vmatprep.mubr.f32.mxu0 0.0
    %1702 = vmatmul.mubr.f32.gmra.mrb[0].mxu0 %v1083
    %v1703 = vpop.f32.mrb[0].mxu0
    %v1704 = vadd.f32 %v1070, %v1703
    %v1705 = vpop.f32.mrb[0].mxu0
    %v1706 = vadd.f32 %v1070, %v1705
    %1707 = vdwg.mxu0
    %1708 = vmatprep.subr.mxu0 %v995
    %1709 = vmatpush1.msra.mxu0 %v994
    %1710 = vmatprep.subr.mxu0 %v1011
    %1711 = vmatpush1.msra.mxu0 %v1010
    %1712 = vmatprep.subr.mxu0 %v1027
    %1713 = vmatpush1.msra.mxu0 %v1026
    %1714 = vmatprep.subr.mxu0 %v1043
    %1715 = vmatpush1.msra.mxu0 %v1042
    %1716 = vmatprep.subr.mxu0 0.0
    %1717 = vmatpush1.msra.mxu0 0.0
    %1718 = vmatprep.subr.mxu0 0.0
    %1719 = vmatpush1.msra.mxu0 0.0
    %1720 = vmatprep.subr.mxu0 0.0
    %1721 = vmatpush1.msra.mxu0 0.0
    %1722 = vmatprep.subr.mxu0 0.0
    %1723 = vmatpush1.msra.mxu0 0.0
    %1724 = vmatprep.subr.mxu0 0.0
    %1725 = vmatpush1.msra.mxu0 0.0
    %1726 = vmatprep.subr.mxu0 0.0
    %1727 = vmatpush1.msra.mxu0 0.0
    %1728 = vmatprep.subr.mxu0 0.0
    %1729 = vmatpush1.msra.mxu0 0.0
    %1730 = vmatprep.subr.mxu0 0.0
    %1731 = vmatpush1.msra.mxu0 0.0
    %1732 = vmatprep.subr.mxu0 0.0
    %1733 = vmatpush1.msra.mxu0 0.0
    %1734 = vmatprep.subr.mxu0 0.0
    %1735 = vmatpush1.msra.mxu0 0.0
    %1736 = vmatprep.subr.mxu0 0.0
    %1737 = vmatpush1.msra.mxu0 0.0
    %1738 = vmatprep.subr.mxu0 0.0
    %1739 = vmatpush1.msra.mxu0 0.0
    %1740 = vmatprep.subr.mxu0 0.0
    %1741 = vmatpush1.msra.mxu0 0.0
    %1742 = vmatprep.subr.mxu0 0.0
    %1743 = vmatpush1.msra.mxu0 0.0
    %1744 = vmatprep.subr.mxu0 0.0
    %1745 = vmatpush1.msra.mxu0 0.0
    %1746 = vmatprep.subr.mxu0 0.0
    %1747 = vmatpush1.msra.mxu0 0.0
    %1748 = vmatprep.subr.mxu0 0.0
    %1749 = vmatpush1.msra.mxu0 0.0
    %1750 = vmatprep.subr.mxu0 0.0
    %1751 = vmatpush1.msra.mxu0 0.0
    %1752 = vmatprep.subr.mxu0 0.0
    %1753 = vmatpush1.msra.mxu0 0.0
    %1754 = vmatprep.subr.mxu0 0.0
    %1755 = vmatpush1.msra.mxu0 0.0
    %1756 = vmatprep.subr.mxu0 0.0
    %1757 = vmatpush1.msra.mxu0 0.0
    %1758 = vmatprep.subr.mxu0 0.0
    %1759 = vmatpush1.msra.mxu0 0.0
    %1760 = vmatprep.subr.mxu0 0.0
    %1761 = vmatpush1.msra.mxu0 0.0
    %1762 = vmatprep.subr.mxu0 0.0
    %1763 = vmatpush1.msra.mxu0 0.0
    %1764 = vmatprep.subr.mxu0 0.0
    %1765 = vmatpush1.msra.mxu0 0.0
    %1766 = vmatprep.subr.mxu0 0.0
    %1767 = vmatpush1.msra.mxu0 0.0
    %1768 = vmatprep.subr.mxu0 0.0
    %1769 = vmatpush1.msra.mxu0 0.0
    %1770 = vmatprep.subr.mxu0 0.0
    %1771 = vmatpush1.msra.mxu0 0.0
    %1772 = vmatprep.mubr.f32.mxu0 0.0
    %1773 = vmatmul.mubr.f32.gmra.mrb[0].mxu0 %v1074
    %v1774 = vpop.f32.mrb[0].mxu0
    %v1775 = vadd.f32 %v1055, %v1774
    %v1776 = vpop.f32.mrb[0].mxu0
    %v1777 = vadd.f32 %v1055, %v1776
    %1778 = vmatprep.mubr.f32.mxu0 0.0
    %1779 = vmatmul.mubr.f32.gmra.mrb[0].mxu0 %v1077
    %v1780 = vpop.f32.mrb[0].mxu0
    %v1781 = vadd.f32 %v1060, %v1780
    %v1782 = vpop.f32.mrb[0].mxu0
    %v1783 = vadd.f32 %v1060, %v1782
    %1784 = vmatprep.mubr.f32.mxu0 0.0
    %1785 = vmatmul.mubr.f32.gmra.mrb[0].mxu0 %v1080
    %v1786 = vpop.f32.mrb[0].mxu0
    %v1787 = vadd.f32 %v1065, %v1786
    %v1788 = vpop.f32.mrb[0].mxu0
    %v1789 = vadd.f32 %v1065, %v1788
    %1790 = vmatprep.mubr.f32.mxu0 0.0
    %1791 = vmatmul.mubr.f32.gmra.mrb[0].mxu0 %v1083
    %v1792 = vpop.f32.mrb[0].mxu0
    %v1793 = vadd.f32 %v1070, %v1792
    %v1794 = vpop.f32.mrb[0].mxu0
    %v1795 = vadd.f32 %v1070, %v1794
    %1796 = vdwg.mxu0
    %v1797 = vtanh.pop %v1152
    %v1798 = vtanh.pop %v1154
    %v1799 = vtanh.pop %v1241
    %v1800 = vtanh.pop %v1243
    %v1801 = vtanh.pop %v1330
    %v1802 = vtanh.pop %v1332
    %v1803 = vtanh.pop %v1419
    %v1804 = vtanh.pop %v1421
    %v1805 = vtanh.pop %v1508
    %v1806 = vtanh.pop %v1510
    %v1807 = vtanh.pop %v1597
    %v1808 = vtanh.pop %v1599
    %v1809 = vtanh.pop %v1686
    %v1810 = vtanh.pop %v1688
    %v1811 = vtanh.pop %v1775
    %v1812 = vtanh.pop %v1777
    %v1813 = vtanh.pop %v1158
    %v1814 = vtanh.pop %v1160
    %v1815 = vtanh.pop %v1247
    %v1816 = vtanh.pop %v1249
    %v1817 = vtanh.pop %v1336
    %v1818 = vtanh.pop %v1338
    %v1819 = vtanh.pop %v1425
    %v1820 = vtanh.pop %v1427
    %v1821 = vtanh.pop %v1514
    %v1822 = vtanh.pop %v1516
    %v1823 = vtanh.pop %v1603
    %v1824 = vtanh.pop %v1605
    %v1825 = vtanh.pop %v1692
    %v1826 = vtanh.pop %v1694
    %v1827 = vtanh.pop %v1781
    %v1828 = vtanh.pop %v1783
    %v1829 = vtanh.pop %v1164
    %v1830 = vtanh.pop %v1166
    %v1831 = vtanh.pop %v1253
    %v1832 = vtanh.pop %v1255
    %v1833 = vtanh.pop %v1342
    %v1834 = vtanh.pop %v1344
    %v1835 = vtanh.pop %v1431
    %v1836 = vtanh.pop %v1433
    %v1837 = vtanh.pop %v1520
    %v1838 = vtanh.pop %v1522
    %v1839 = vtanh.pop %v1609
    %v1840 = vtanh.pop %v1611
    %v1841 = vtanh.pop %v1698
    %v1842 = vtanh.pop %v1700
    %v1843 = vtanh.pop %v1787
    %v1844 = vtanh.pop %v1789
    %v1845 = vtanh.pop %v1170
    %v1846 = vtanh.pop %v1172
    %v1847 = vtanh.pop %v1259
    %v1848 = vtanh.pop %v1261
    %v1849 = vtanh.pop %v1348
    %v1850 = vtanh.pop %v1350
    %v1851 = vtanh.pop %v1437
    %v1852 = vtanh.pop %v1439
    %v1853 = vtanh.pop %v1526
    %v1854 = vtanh.pop %v1528
    %v1855 = vtanh.pop %v1615
    %v1856 = vtanh.pop %v1617
    %v1857 = vtanh.pop %v1704
    %v1858 = vtanh.pop %v1706
    %v1859 = vtanh.pop %v1793
    %v1860 = vtanh.pop %v1795
    %v1861 = vld [vmem:[%s8] sm:$0x3]
    %v1862 = vld [vmem:[%s9] sm:$0x3]
    %1864 = vset.pattern.permute.xlu0 0
    %1865 = vperm.xlu0 %1864, %v1862
    %v1866 = vpop.permute.xlu0 %1865
    %v1869 = vsel %vm1072, %v1861, 0
    %1871 = vmatprep.subr.mxu0 %v1798
    %1872 = vmatpush1.msra.mxu0 %v1797
    %1873 = vmatprep.subr.mxu0 %v1814
    %1874 = vmatpush1.msra.mxu0 %v1813
    %1875 = vmatprep.subr.mxu0 %v1830
    %1876 = vmatpush1.msra.mxu0 %v1829
    %1877 = vmatprep.subr.mxu0 %v1846
    %1878 = vmatpush1.msra.mxu0 %v1845
    %1879 = vmatprep.subr.mxu0 0.0
    %1880 = vmatpush1.msra.mxu0 0.0
    %1881 = vmatprep.subr.mxu0 0.0
    %1882 = vmatpush1.msra.mxu0 0.0
    %1883 = vmatprep.subr.mxu0 0.0
    %1884 = vmatpush1.msra.mxu0 0.0
    %1885 = vmatprep.subr.mxu0 0.0
    %1886 = vmatpush1.msra.mxu0 0.0
    %1887 = vmatprep.subr.mxu0 0.0
    %1888 = vmatpush1.msra.mxu0 0.0
    %1889 = vmatprep.subr.mxu0 0.0
    %1890 = vmatpush1.msra.mxu0 0.0
    %1891 = vmatprep.subr.mxu0 0.0
    %1892 = vmatpush1.msra.mxu0 0.0
    %1893 = vmatprep.subr.mxu0 0.0
    %1894 = vmatpush1.msra.mxu0 0.0
    %1895 = vmatprep.subr.mxu0 0.0
    %1896 = vmatpush1.msra.mxu0 0.0
    %1897 = vmatprep.subr.mxu0 0.0
    %1898 = vmatpush1.msra.mxu0 0.0
    %1899 = vmatprep.subr.mxu0 0.0
    %1900 = vmatpush1.msra.mxu0 0.0
    %1901 = vmatprep.subr.mxu0 0.0
    %1902 = vmatpush1.msra.mxu0 0.0
    %1903 = vmatprep.subr.mxu0 0.0
    %1904 = vmatpush1.msra.mxu0 0.0
    %1905 = vmatprep.subr.mxu0 0.0
    %1906 = vmatpush1.msra.mxu0 0.0
    %1907 = vmatprep.subr.mxu0 0.0
    %1908 = vmatpush1.msra.mxu0 0.0
    %1909 = vmatprep.subr.mxu0 0.0
    %1910 = vmatpush1.msra.mxu0 0.0
    %1911 = vmatprep.subr.mxu0 0.0
    %1912 = vmatpush1.msra.mxu0 0.0
    %1913 = vmatprep.subr.mxu0 0.0
    %1914 = vmatpush1.msra.mxu0 0.0
    %1915 = vmatprep.subr.mxu0 0.0
    %1916 = vmatpush1.msra.mxu0 0.0
    %1917 = vmatprep.subr.mxu0 0.0
    %1918 = vmatpush1.msra.mxu0 0.0
    %1919 = vmatprep.subr.mxu0 0.0
    %1920 = vmatpush1.msra.mxu0 0.0
    %1921 = vmatprep.subr.mxu0 0.0
    %1922 = vmatpush1.msra.mxu0 0.0
    %1923 = vmatprep.subr.mxu0 0.0
    %1924 = vmatpush1.msra.mxu0 0.0
    %1925 = vmatprep.subr.mxu0 0.0
    %1926 = vmatpush1.msra.mxu0 0.0
    %1927 = vmatprep.subr.mxu0 0.0
    %1928 = vmatpush1.msra.mxu0 0.0
    %1929 = vmatprep.subr.mxu0 0.0
    %1930 = vmatpush1.msra.mxu0 0.0
    %1931 = vmatprep.subr.mxu0 0.0
    %1932 = vmatpush1.msra.mxu0 0.0
    %1933 = vmatprep.subr.mxu0 0.0
    %1934 = vmatpush1.msra.mxu0 0.0
    %1935 = vmatprep.mubr.f32.mxu0 0.0
    %1936 = vmatmul.mubr.f32.gmra.mrb[0].mxu0 %v1869
    %v1937 = vpop.f32.mrb[0].mxu0
    %v1938 = vadd.f32 %v1866, %v1937
    %v1939 = vpop.f32.mrb[0].mxu0
    %v1940 = vadd.f32 %v1866, %v1939
    %1941 = vdwg.mxu0
    %1942 = vmatprep.subr.mxu0 %v1800
    %1943 = vmatpush1.msra.mxu0 %v1799
    %1944 = vmatprep.subr.mxu0 %v1816
    %1945 = vmatpush1.msra.mxu0 %v1815
    %1946 = vmatprep.subr.mxu0 %v1832
    %1947 = vmatpush1.msra.mxu0 %v1831
    %1948 = vmatprep.subr.mxu0 %v1848
    %1949 = vmatpush1.msra.mxu0 %v1847
    %1950 = vmatprep.subr.mxu0 0.0
    %1951 = vmatpush1.msra.mxu0 0.0
    %1952 = vmatprep.subr.mxu0 0.0
    %1953 = vmatpush1.msra.mxu0 0.0
    %1954 = vmatprep.subr.mxu0 0.0
    %1955 = vmatpush1.msra.mxu0 0.0
    %1956 = vmatprep.subr.mxu0 0.0
    %1957 = vmatpush1.msra.mxu0 0.0
    %1958 = vmatprep.subr.mxu0 0.0
    %1959 = vmatpush1.msra.mxu0 0.0
    %1960 = vmatprep.subr.mxu0 0.0
    %1961 = vmatpush1.msra.mxu0 0.0
    %1962 = vmatprep.subr.mxu0 0.0
    %1963 = vmatpush1.msra.mxu0 0.0
    %1964 = vmatprep.subr.mxu0 0.0
    %1965 = vmatpush1.msra.mxu0 0.0
    %1966 = vmatprep.subr.mxu0 0.0
    %1967 = vmatpush1.msra.mxu0 0.0
    %1968 = vmatprep.subr.mxu0 0.0
    %1969 = vmatpush1.msra.mxu0 0.0
    %1970 = vmatprep.subr.mxu0 0.0
    %1971 = vmatpush1.msra.mxu0 0.0
    %1972 = vmatprep.subr.mxu0 0.0
    %1973 = vmatpush1.msra.mxu0 0.0
    %1974 = vmatprep.subr.mxu0 0.0
    %1975 = vmatpush1.msra.mxu0 0.0
    %1976 = vmatprep.subr.mxu0 0.0
    %1977 = vmatpush1.msra.mxu0 0.0
    %1978 = vmatprep.subr.mxu0 0.0
    %1979 = vmatpush1.msra.mxu0 0.0
    %1980 = vmatprep.subr.mxu0 0.0
    %1981 = vmatpush1.msra.mxu0 0.0
    %1982 = vmatprep.subr.mxu0 0.0
    %1983 = vmatpush1.msra.mxu0 0.0
    %1984 = vmatprep.subr.mxu0 0.0
    %1985 = vmatpush1.msra.mxu0 0.0
    %1986 = vmatprep.subr.mxu0 0.0
    %1987 = vmatpush1.msra.mxu0 0.0
    %1988 = vmatprep.subr.mxu0 0.0
    %1989 = vmatpush1.msra.mxu0 0.0
    %1990 = vmatprep.subr.mxu0 0.0
    %1991 = vmatpush1.msra.mxu0 0.0
    %1992 = vmatprep.subr.mxu0 0.0
    %1993 = vmatpush1.msra.mxu0 0.0
    %1994 = vmatprep.subr.mxu0 0.0
    %1995 = vmatpush1.msra.mxu0 0.0
    %1996 = vmatprep.subr.mxu0 0.0
    %1997 = vmatpush1.msra.mxu0 0.0
    %1998 = vmatprep.subr.mxu0 0.0
    %1999 = vmatpush1.msra.mxu0 0.0
    %2000 = vmatprep.subr.mxu0 0.0
    %2001 = vmatpush1.msra.mxu0 0.0
    %2002 = vmatprep.subr.mxu0 0.0
    %2003 = vmatpush1.msra.mxu0 0.0
    %2004 = vmatprep.subr.mxu0 0.0
    %2005 = vmatpush1.msra.mxu0 0.0
    %2006 = vmatprep.mubr.f32.mxu0 0.0
    %2007 = vmatmul.mubr.f32.gmra.mrb[0].mxu0 %v1869
    %v2008 = vpop.f32.mrb[0].mxu0
    %v2009 = vadd.f32 %v1866, %v2008
    %v2010 = vpop.f32.mrb[0].mxu0
    %v2011 = vadd.f32 %v1866, %v2010
    %2012 = vdwg.mxu0
    %2013 = vmatprep.subr.mxu0 %v1802
    %2014 = vmatpush1.msra.mxu0 %v1801
    %2015 = vmatprep.subr.mxu0 %v1818
    %2016 = vmatpush1.msra.mxu0 %v1817
    %2017 = vmatprep.subr.mxu0 %v1834
    %2018 = vmatpush1.msra.mxu0 %v1833
    %2019 = vmatprep.subr.mxu0 %v1850
    %2020 = vmatpush1.msra.mxu0 %v1849
    %2021 = vmatprep.subr.mxu0 0.0
    %2022 = vmatpush1.msra.mxu0 0.0
    %2023 = vmatprep.subr.mxu0 0.0
    %2024 = vmatpush1.msra.mxu0 0.0
    %2025 = vmatprep.subr.mxu0 0.0
    %2026 = vmatpush1.msra.mxu0 0.0
    %2027 = vmatprep.subr.mxu0 0.0
    %2028 = vmatpush1.msra.mxu0 0.0
    %2029 = vmatprep.subr.mxu0 0.0
    %2030 = vmatpush1.msra.mxu0 0.0
    %2031 = vmatprep.subr.mxu0 0.0
    %2032 = vmatpush1.msra.mxu0 0.0
    %2033 = vmatprep.subr.mxu0 0.0
    %2034 = vmatpush1.msra.mxu0 0.0
    %2035 = vmatprep.subr.mxu0 0.0
    %2036 = vmatpush1.msra.mxu0 0.0
    %2037 = vmatprep.subr.mxu0 0.0
    %2038 = vmatpush1.msra.mxu0 0.0
    %2039 = vmatprep.subr.mxu0 0.0
    %2040 = vmatpush1.msra.mxu0 0.0
    %2041 = vmatprep.subr.mxu0 0.0
    %2042 = vmatpush1.msra.mxu0 0.0
    %2043 = vmatprep.subr.mxu0 0.0
    %2044 = vmatpush1.msra.mxu0 0.0
    %2045 = vmatprep.subr.mxu0 0.0
    %2046 = vmatpush1.msra.mxu0 0.0
    %2047 = vmatprep.subr.mxu0 0.0
    %2048 = vmatpush1.msra.mxu0 0.0
    %2049 = vmatprep.subr.mxu0 0.0
    %2050 = vmatpush1.msra.mxu0 0.0
    %2051 = vmatprep.subr.mxu0 0.0
    %2052 = vmatpush1.msra.mxu0 0.0
    %2053 = vmatprep.subr.mxu0 0.0
    %2054 = vmatpush1.msra.mxu0 0.0
    %2055 = vmatprep.subr.mxu0 0.0
    %2056 = vmatpush1.msra.mxu0 0.0
    %2057 = vmatprep.subr.mxu0 0.0
    %2058 = vmatpush1.msra.mxu0 0.0
    %2059 = vmatprep.subr.mxu0 0.0
    %2060 = vmatpush1.msra.mxu0 0.0
    %2061 = vmatprep.subr.mxu0 0.0
    %2062 = vmatpush1.msra.mxu0 0.0
    %2063 = vmatprep.subr.mxu0 0.0
    %2064 = vmatpush1.msra.mxu0 0.0
    %2065 = vmatprep.subr.mxu0 0.0
    %2066 = vmatpush1.msra.mxu0 0.0
    %2067 = vmatprep.subr.mxu0 0.0
    %2068 = vmatpush1.msra.mxu0 0.0
    %2069 = vmatprep.subr.mxu0 0.0
    %2070 = vmatpush1.msra.mxu0 0.0
    %2071 = vmatprep.subr.mxu0 0.0
    %2072 = vmatpush1.msra.mxu0 0.0
    %2073 = vmatprep.subr.mxu0 0.0
    %2074 = vmatpush1.msra.mxu0 0.0
    %2075 = vmatprep.subr.mxu0 0.0
    %2076 = vmatpush1.msra.mxu0 0.0
    %2077 = vmatprep.mubr.f32.mxu0 0.0
    %2078 = vmatmul.mubr.f32.gmra.mrb[0].mxu0 %v1869
    %v2079 = vpop.f32.mrb[0].mxu0
    %v2080 = vadd.f32 %v1866, %v2079
    %v2081 = vpop.f32.mrb[0].mxu0
    %v2082 = vadd.f32 %v1866, %v2081
    %2083 = vdwg.mxu0
    %2084 = vmatprep.subr.mxu0 %v1804
    %2085 = vmatpush1.msra.mxu0 %v1803
    %2086 = vmatprep.subr.mxu0 %v1820
    %2087 = vmatpush1.msra.mxu0 %v1819
    %2088 = vmatprep.subr.mxu0 %v1836
    %2089 = vmatpush1.msra.mxu0 %v1835
    %2090 = vmatprep.subr.mxu0 %v1852
    %2091 = vmatpush1.msra.mxu0 %v1851
    %2092 = vmatprep.subr.mxu0 0.0
    %2093 = vmatpush1.msra.mxu0 0.0
    %2094 = vmatprep.subr.mxu0 0.0
    %2095 = vmatpush1.msra.mxu0 0.0
    %2096 = vmatprep.subr.mxu0 0.0
    %2097 = vmatpush1.msra.mxu0 0.0
    %2098 = vmatprep.subr.mxu0 0.0
    %2099 = vmatpush1.msra.mxu0 0.0
    %2100 = vmatprep.subr.mxu0 0.0
    %2101 = vmatpush1.msra.mxu0 0.0
    %2102 = vmatprep.subr.mxu0 0.0
    %2103 = vmatpush1.msra.mxu0 0.0
    %2104 = vmatprep.subr.mxu0 0.0
    %2105 = vmatpush1.msra.mxu0 0.0
    %2106 = vmatprep.subr.mxu0 0.0
    %2107 = vmatpush1.msra.mxu0 0.0
    %2108 = vmatprep.subr.mxu0 0.0
    %2109 = vmatpush1.msra.mxu0 0.0
    %2110 = vmatprep.subr.mxu0 0.0
    %2111 = vmatpush1.msra.mxu0 0.0
    %2112 = vmatprep.subr.mxu0 0.0
    %2113 = vmatpush1.msra.mxu0 0.0
    %2114 = vmatprep.subr.mxu0 0.0
    %2115 = vmatpush1.msra.mxu0 0.0
    %2116 = vmatprep.subr.mxu0 0.0
    %2117 = vmatpush1.msra.mxu0 0.0
    %2118 = vmatprep.subr.mxu0 0.0
    %2119 = vmatpush1.msra.mxu0 0.0
    %2120 = vmatprep.subr.mxu0 0.0
    %2121 = vmatpush1.msra.mxu0 0.0
    %2122 = vmatprep.subr.mxu0 0.0
    %2123 = vmatpush1.msra.mxu0 0.0
    %2124 = vmatprep.subr.mxu0 0.0
    %2125 = vmatpush1.msra.mxu0 0.0
    %2126 = vmatprep.subr.mxu0 0.0
    %2127 = vmatpush1.msra.mxu0 0.0
    %2128 = vmatprep.subr.mxu0 0.0
    %2129 = vmatpush1.msra.mxu0 0.0
    %2130 = vmatprep.subr.mxu0 0.0
    %2131 = vmatpush1.msra.mxu0 0.0
    %2132 = vmatprep.subr.mxu0 0.0
    %2133 = vmatpush1.msra.mxu0 0.0
    %2134 = vmatprep.subr.mxu0 0.0
    %2135 = vmatpush1.msra.mxu0 0.0
    %2136 = vmatprep.subr.mxu0 0.0
    %2137 = vmatpush1.msra.mxu0 0.0
    %2138 = vmatprep.subr.mxu0 0.0
    %2139 = vmatpush1.msra.mxu0 0.0
    %2140 = vmatprep.subr.mxu0 0.0
    %2141 = vmatpush1.msra.mxu0 0.0
    %2142 = vmatprep.subr.mxu0 0.0
    %2143 = vmatpush1.msra.mxu0 0.0
    %2144 = vmatprep.subr.mxu0 0.0
    %2145 = vmatpush1.msra.mxu0 0.0
    %2146 = vmatprep.subr.mxu0 0.0
    %2147 = vmatpush1.msra.mxu0 0.0
    %2148 = vmatprep.mubr.f32.mxu0 0.0
    %2149 = vmatmul.mubr.f32.gmra.mrb[0].mxu0 %v1869
    %v2150 = vpop.f32.mrb[0].mxu0
    %v2151 = vadd.f32 %v1866, %v2150
    %v2152 = vpop.f32.mrb[0].mxu0
    %v2153 = vadd.f32 %v1866, %v2152
    %2154 = vdwg.mxu0
    %2155 = vmatprep.subr.mxu0 %v1806
    %2156 = vmatpush1.msra.mxu0 %v1805
    %2157 = vmatprep.subr.mxu0 %v1822
    %2158 = vmatpush1.msra.mxu0 %v1821
    %2159 = vmatprep.subr.mxu0 %v1838
    %2160 = vmatpush1.msra.mxu0 %v1837
    %2161 = vmatprep.subr.mxu0 %v1854
    %2162 = vmatpush1.msra.mxu0 %v1853
    %2163 = vmatprep.subr.mxu0 0.0
    %2164 = vmatpush1.msra.mxu0 0.0
    %2165 = vmatprep.subr.mxu0 0.0
    %2166 = vmatpush1.msra.mxu0 0.0
    %2167 = vmatprep.subr.mxu0 0.0
    %2168 = vmatpush1.msra.mxu0 0.0
    %2169 = vmatprep.subr.mxu0 0.0
    %2170 = vmatpush1.msra.mxu0 0.0
    %2171 = vmatprep.subr.mxu0 0.0
    %2172 = vmatpush1.msra.mxu0 0.0
    %2173 = vmatprep.subr.mxu0 0.0
    %2174 = vmatpush1.msra.mxu0 0.0
    %2175 = vmatprep.subr.mxu0 0.0
    %2176 = vmatpush1.msra.mxu0 0.0
    %2177 = vmatprep.subr.mxu0 0.0
    %2178 = vmatpush1.msra.mxu0 0.0
    %2179 = vmatprep.subr.mxu0 0.0
    %2180 = vmatpush1.msra.mxu0 0.0
    %2181 = vmatprep.subr.mxu0 0.0
    %2182 = vmatpush1.msra.mxu0 0.0
    %2183 = vmatprep.subr.mxu0 0.0
    %2184 = vmatpush1.msra.mxu0 0.0
    %2185 = vmatprep.subr.mxu0 0.0
    %2186 = vmatpush1.msra.mxu0 0.0
    %2187 = vmatprep.subr.mxu0 0.0
    %2188 = vmatpush1.msra.mxu0 0.0
    %2189 = vmatprep.subr.mxu0 0.0
    %2190 = vmatpush1.msra.mxu0 0.0
    %2191 = vmatprep.subr.mxu0 0.0
    %2192 = vmatpush1.msra.mxu0 0.0
    %2193 = vmatprep.subr.mxu0 0.0
    %2194 = vmatpush1.msra.mxu0 0.0
    %2195 = vmatprep.subr.mxu0 0.0
    %2196 = vmatpush1.msra.mxu0 0.0
    %2197 = vmatprep.subr.mxu0 0.0
    %2198 = vmatpush1.msra.mxu0 0.0
    %2199 = vmatprep.subr.mxu0 0.0
    %2200 = vmatpush1.msra.mxu0 0.0
    %2201 = vmatprep.subr.mxu0 0.0
    %2202 = vmatpush1.msra.mxu0 0.0
    %2203 = vmatprep.subr.mxu0 0.0
    %2204 = vmatpush1.msra.mxu0 0.0
    %2205 = vmatprep.subr.mxu0 0.0
    %2206 = vmatpush1.msra.mxu0 0.0
    %2207 = vmatprep.subr.mxu0 0.0
    %2208 = vmatpush1.msra.mxu0 0.0
    %2209 = vmatprep.subr.mxu0 0.0
    %2210 = vmatpush1.msra.mxu0 0.0
    %2211 = vmatprep.subr.mxu0 0.0
    %2212 = vmatpush1.msra.mxu0 0.0
    %2213 = vmatprep.subr.mxu0 0.0
    %2214 = vmatpush1.msra.mxu0 0.0
    %2215 = vmatprep.subr.mxu0 0.0
    %2216 = vmatpush1.msra.mxu0 0.0
    %2217 = vmatprep.subr.mxu0 0.0
    %2218 = vmatpush1.msra.mxu0 0.0
    %2219 = vmatprep.mubr.f32.mxu0 0.0
    %2220 = vmatmul.mubr.f32.gmra.mrb[0].mxu0 %v1869
    %v2221 = vpop.f32.mrb[0].mxu0
    %v2222 = vadd.f32 %v1866, %v2221
    %v2223 = vpop.f32.mrb[0].mxu0
    %v2224 = vadd.f32 %v1866, %v2223
    %2225 = vdwg.mxu0
    %2226 = vmatprep.subr.mxu0 %v1808
    %2227 = vmatpush1.msra.mxu0 %v1807
    %2228 = vmatprep.subr.mxu0 %v1824
    %2229 = vmatpush1.msra.mxu0 %v1823
    %2230 = vmatprep.subr.mxu0 %v1840
    %2231 = vmatpush1.msra.mxu0 %v1839
    %2232 = vmatprep.subr.mxu0 %v1856
    %2233 = vmatpush1.msra.mxu0 %v1855
    %2234 = vmatprep.subr.mxu0 0.0
    %2235 = vmatpush1.msra.mxu0 0.0
    %2236 = vmatprep.subr.mxu0 0.0
    %2237 = vmatpush1.msra.mxu0 0.0
    %2238 = vmatprep.subr.mxu0 0.0
    %2239 = vmatpush1.msra.mxu0 0.0
    %2240 = vmatprep.subr.mxu0 0.0
    %2241 = vmatpush1.msra.mxu0 0.0
    %2242 = vmatprep.subr.mxu0 0.0
    %2243 = vmatpush1.msra.mxu0 0.0
    %2244 = vmatprep.subr.mxu0 0.0
    %2245 = vmatpush1.msra.mxu0 0.0
    %2246 = vmatprep.subr.mxu0 0.0
    %2247 = vmatpush1.msra.mxu0 0.0
    %2248 = vmatprep.subr.mxu0 0.0
    %2249 = vmatpush1.msra.mxu0 0.0
    %2250 = vmatprep.subr.mxu0 0.0
    %2251 = vmatpush1.msra.mxu0 0.0
    %2252 = vmatprep.subr.mxu0 0.0
    %2253 = vmatpush1.msra.mxu0 0.0
    %2254 = vmatprep.subr.mxu0 0.0
    %2255 = vmatpush1.msra.mxu0 0.0
    %2256 = vmatprep.subr.mxu0 0.0
    %2257 = vmatpush1.msra.mxu0 0.0
    %2258 = vmatprep.subr.mxu0 0.0
    %2259 = vmatpush1.msra.mxu0 0.0
    %2260 = vmatprep.subr.mxu0 0.0
    %2261 = vmatpush1.msra.mxu0 0.0
    %2262 = vmatprep.subr.mxu0 0.0
    %2263 = vmatpush1.msra.mxu0 0.0
    %2264 = vmatprep.subr.mxu0 0.0
    %2265 = vmatpush1.msra.mxu0 0.0
    %2266 = vmatprep.subr.mxu0 0.0
    %2267 = vmatpush1.msra.mxu0 0.0
    %2268 = vmatprep.subr.mxu0 0.0
    %2269 = vmatpush1.msra.mxu0 0.0
    %2270 = vmatprep.subr.mxu0 0.0
    %2271 = vmatpush1.msra.mxu0 0.0
    %2272 = vmatprep.subr.mxu0 0.0
    %2273 = vmatpush1.msra.mxu0 0.0
    %2274 = vmatprep.subr.mxu0 0.0
    %2275 = vmatpush1.msra.mxu0 0.0
    %2276 = vmatprep.subr.mxu0 0.0
    %2277 = vmatpush1.msra.mxu0 0.0
    %2278 = vmatprep.subr.mxu0 0.0
    %2279 = vmatpush1.msra.mxu0 0.0
    %2280 = vmatprep.subr.mxu0 0.0
    %2281 = vmatpush1.msra.mxu0 0.0
    %2282 = vmatprep.subr.mxu0 0.0
    %2283 = vmatpush1.msra.mxu0 0.0
    %2284 = vmatprep.subr.mxu0 0.0
    %2285 = vmatpush1.msra.mxu0 0.0
    %2286 = vmatprep.subr.mxu0 0.0
    %2287 = vmatpush1.msra.mxu0 0.0
    %2288 = vmatprep.subr.mxu0 0.0
    %2289 = vmatpush1.msra.mxu0 0.0
    %2290 = vmatprep.mubr.f32.mxu0 0.0
    %2291 = vmatmul.mubr.f32.gmra.mrb[0].mxu0 %v1869
    %v2292 = vpop.f32.mrb[0].mxu0
    %v2293 = vadd.f32 %v1866, %v2292
    %v2294 = vpop.f32.mrb[0].mxu0
    %v2295 = vadd.f32 %v1866, %v2294
    %2296 = vdwg.mxu0
    %2297 = vmatprep.subr.mxu0 %v1810
    %2298 = vmatpush1.msra.mxu0 %v1809
    %2299 = vmatprep.subr.mxu0 %v1826
    %2300 = vmatpush1.msra.mxu0 %v1825
    %2301 = vmatprep.subr.mxu0 %v1842
    %2302 = vmatpush1.msra.mxu0 %v1841
    %2303 = vmatprep.subr.mxu0 %v1858
    %2304 = vmatpush1.msra.mxu0 %v1857
    %2305 = vmatprep.subr.mxu0 0.0
    %2306 = vmatpush1.msra.mxu0 0.0
    %2307 = vmatprep.subr.mxu0 0.0
    %2308 = vmatpush1.msra.mxu0 0.0
    %2309 = vmatprep.subr.mxu0 0.0
    %2310 = vmatpush1.msra.mxu0 0.0
    %2311 = vmatprep.subr.mxu0 0.0
    %2312 = vmatpush1.msra.mxu0 0.0
    %2313 = vmatprep.subr.mxu0 0.0
    %2314 = vmatpush1.msra.mxu0 0.0
    %2315 = vmatprep.subr.mxu0 0.0
    %2316 = vmatpush1.msra.mxu0 0.0
    %2317 = vmatprep.subr.mxu0 0.0
    %2318 = vmatpush1.msra.mxu0 0.0
    %2319 = vmatprep.subr.mxu0 0.0
    %2320 = vmatpush1.msra.mxu0 0.0
    %2321 = vmatprep.subr.mxu0 0.0
    %2322 = vmatpush1.msra.mxu0 0.0
    %2323 = vmatprep.subr.mxu0 0.0
    %2324 = vmatpush1.msra.mxu0 0.0
    %2325 = vmatprep.subr.mxu0 0.0
    %2326 = vmatpush1.msra.mxu0 0.0
    %2327 = vmatprep.subr.mxu0 0.0
    %2328 = vmatpush1.msra.mxu0 0.0
    %2329 = vmatprep.subr.mxu0 0.0
    %2330 = vmatpush1.msra.mxu0 0.0
    %2331 = vmatprep.subr.mxu0 0.0
    %2332 = vmatpush1.msra.mxu0 0.0
    %2333 = vmatprep.subr.mxu0 0.0
    %2334 = vmatpush1.msra.mxu0 0.0
    %2335 = vmatprep.subr.mxu0 0.0
    %2336 = vmatpush1.msra.mxu0 0.0
    %2337 = vmatprep.subr.mxu0 0.0
    %2338 = vmatpush1.msra.mxu0 0.0
    %2339 = vmatprep.subr.mxu0 0.0
    %2340 = vmatpush1.msra.mxu0 0.0
    %2341 = vmatprep.subr.mxu0 0.0
    %2342 = vmatpush1.msra.mxu0 0.0
    %2343 = vmatprep.subr.mxu0 0.0
    %2344 = vmatpush1.msra.mxu0 0.0
    %2345 = vmatprep.subr.mxu0 0.0
    %2346 = vmatpush1.msra.mxu0 0.0
    %2347 = vmatprep.subr.mxu0 0.0
    %2348 = vmatpush1.msra.mxu0 0.0
    %2349 = vmatprep.subr.mxu0 0.0
    %2350 = vmatpush1.msra.mxu0 0.0
    %2351 = vmatprep.subr.mxu0 0.0
    %2352 = vmatpush1.msra.mxu0 0.0
    %2353 = vmatprep.subr.mxu0 0.0
    %2354 = vmatpush1.msra.mxu0 0.0
    %2355 = vmatprep.subr.mxu0 0.0
    %2356 = vmatpush1.msra.mxu0 0.0
    %2357 = vmatprep.subr.mxu0 0.0
    %2358 = vmatpush1.msra.mxu0 0.0
    %2359 = vmatprep.subr.mxu0 0.0
    %2360 = vmatpush1.msra.mxu0 0.0
    %2361 = vmatprep.mubr.f32.mxu0 0.0
    %2362 = vmatmul.mubr.f32.gmra.mrb[0].mxu0 %v1869
    %v2363 = vpop.f32.mrb[0].mxu0
    %v2364 = vadd.f32 %v1866, %v2363
    %v2365 = vpop.f32.mrb[0].mxu0
    %v2366 = vadd.f32 %v1866, %v2365
    %2367 = vdwg.mxu0
    %2368 = vmatprep.subr.mxu0 %v1812
    %2369 = vmatpush1.msra.mxu0 %v1811
    %2370 = vmatprep.subr.mxu0 %v1828
    %2371 = vmatpush1.msra.mxu0 %v1827
    %2372 = vmatprep.subr.mxu0 %v1844
    %2373 = vmatpush1.msra.mxu0 %v1843
    %2374 = vmatprep.subr.mxu0 %v1860
    %2375 = vmatpush1.msra.mxu0 %v1859
    %2376 = vmatprep.subr.mxu0 0.0
    %2377 = vmatpush1.msra.mxu0 0.0
    %2378 = vmatprep.subr.mxu0 0.0
    %2379 = vmatpush1.msra.mxu0 0.0
    %2380 = vmatprep.subr.mxu0 0.0
    %2381 = vmatpush1.msra.mxu0 0.0
    %2382 = vmatprep.subr.mxu0 0.0
    %2383 = vmatpush1.msra.mxu0 0.0
    %2384 = vmatprep.subr.mxu0 0.0
    %2385 = vmatpush1.msra.mxu0 0.0
    %2386 = vmatprep.subr.mxu0 0.0
    %2387 = vmatpush1.msra.mxu0 0.0
    %2388 = vmatprep.subr.mxu0 0.0
    %2389 = vmatpush1.msra.mxu0 0.0
    %2390 = vmatprep.subr.mxu0 0.0
    %2391 = vmatpush1.msra.mxu0 0.0
    %2392 = vmatprep.subr.mxu0 0.0
    %2393 = vmatpush1.msra.mxu0 0.0
    %2394 = vmatprep.subr.mxu0 0.0
    %2395 = vmatpush1.msra.mxu0 0.0
    %2396 = vmatprep.subr.mxu0 0.0
    %2397 = vmatpush1.msra.mxu0 0.0
    %2398 = vmatprep.subr.mxu0 0.0
    %2399 = vmatpush1.msra.mxu0 0.0
    %2400 = vmatprep.subr.mxu0 0.0
    %2401 = vmatpush1.msra.mxu0 0.0
    %2402 = vmatprep.subr.mxu0 0.0
    %2403 = vmatpush1.msra.mxu0 0.0
    %2404 = vmatprep.subr.mxu0 0.0
    %2405 = vmatpush1.msra.mxu0 0.0
    %2406 = vmatprep.subr.mxu0 0.0
    %2407 = vmatpush1.msra.mxu0 0.0
    %2408 = vmatprep.subr.mxu0 0.0
    %2409 = vmatpush1.msra.mxu0 0.0
    %2410 = vmatprep.subr.mxu0 0.0
    %2411 = vmatpush1.msra.mxu0 0.0
    %2412 = vmatprep.subr.mxu0 0.0
    %2413 = vmatpush1.msra.mxu0 0.0
    %2414 = vmatprep.subr.mxu0 0.0
    %2415 = vmatpush1.msra.mxu0 0.0
    %2416 = vmatprep.subr.mxu0 0.0
    %2417 = vmatpush1.msra.mxu0 0.0
    %2418 = vmatprep.subr.mxu0 0.0
    %2419 = vmatpush1.msra.mxu0 0.0
    %2420 = vmatprep.subr.mxu0 0.0
    %2421 = vmatpush1.msra.mxu0 0.0
    %2422 = vmatprep.subr.mxu0 0.0
    %2423 = vmatpush1.msra.mxu0 0.0
    %2424 = vmatprep.subr.mxu0 0.0
    %2425 = vmatpush1.msra.mxu0 0.0
    %2426 = vmatprep.subr.mxu0 0.0
    %2427 = vmatpush1.msra.mxu0 0.0
    %2428 = vmatprep.subr.mxu0 0.0
    %2429 = vmatpush1.msra.mxu0 0.0
    %2430 = vmatprep.subr.mxu0 0.0
    %2431 = vmatpush1.msra.mxu0 0.0
    %2432 = vmatprep.mubr.f32.mxu0 0.0
    %2433 = vmatmul.mubr.f32.gmra.mrb[0].mxu0 %v1869
    %v2434 = vpop.f32.mrb[0].mxu0
    %v2435 = vadd.f32 %v1866, %v2434
    %v2436 = vpop.f32.mrb[0].mxu0
    %v2437 = vadd.f32 %v1866, %v2436
    %2438 = vdwg.mxu0
    %v2455 = vcombine.low %v1938, %v1940
    %v2456 = vcombine.low %v2009, %v2011
    %v2458 = vunpack.c.l.s4 1983009808
    %v2459 = vunpack.c.0.s8 %v2458
    %v2460 = vlaneseq
    %v2461 = vshrl.u32 %v2460, 7
    %v2462 = vsub.s32 %v2459, %v2461
    %v2463 = vrot.slane %v2455, %v2462
    %v2465 = vunpack.c.l.s4 1983009808
    %v2466 = vunpack.c.0.s8 %v2465
    %v2467 = vlaneseq
    %v2468 = vshrl.u32 %v2467, 7
    %v2469 = vsub.s32 %v2466, %v2468
    %v2470 = vrot.slane %v2456, %v2469
    %v2471 = vcombine.low %v2463, %v2470
    %v2472 = vcombine.low %v2080, %v2082
    %v2473 = vcombine.low %v2151, %v2153
    %v2475 = vunpack.c.l.s4 1983009808
    %v2476 = vunpack.c.0.s8 %v2475
    %v2477 = vlaneseq
    %v2478 = vshrl.u32 %v2477, 7
    %v2479 = vsub.s32 %v2476, %v2478
    %v2480 = vrot.slane %v2472, %v2479
    %v2482 = vunpack.c.l.s4 1983009808
    %v2483 = vunpack.c.0.s8 %v2482
    %v2484 = vlaneseq
    %v2485 = vshrl.u32 %v2484, 7
    %v2486 = vsub.s32 %v2483, %v2485
    %v2487 = vrot.slane %v2473, %v2486
    %v2488 = vcombine.low %v2480, %v2487
    %v2489 = vcombine.low %v2222, %v2224
    %v2490 = vcombine.low %v2293, %v2295
    %v2492 = vunpack.c.l.s4 1983009808
    %v2493 = vunpack.c.0.s8 %v2492
    %v2494 = vlaneseq
    %v2495 = vshrl.u32 %v2494, 7
    %v2496 = vsub.s32 %v2493, %v2495
    %v2497 = vrot.slane %v2489, %v2496
    %v2499 = vunpack.c.l.s4 1983009808
    %v2500 = vunpack.c.0.s8 %v2499
    %v2501 = vlaneseq
    %v2502 = vshrl.u32 %v2501, 7
    %v2503 = vsub.s32 %v2500, %v2502
    %v2504 = vrot.slane %v2490, %v2503
    %v2505 = vcombine.low %v2497, %v2504
    %v2506 = vcombine.low %v2364, %v2366
    %v2507 = vcombine.low %v2435, %v2437
    %v2509 = vunpack.c.l.s4 1983009808
    %v2510 = vunpack.c.0.s8 %v2509
    %v2511 = vlaneseq
    %v2512 = vshrl.u32 %v2511, 7
    %v2513 = vsub.s32 %v2510, %v2512
    %v2514 = vrot.slane %v2506, %v2513
    %v2516 = vunpack.c.l.s4 1983009808
    %v2517 = vunpack.c.0.s8 %v2516
    %v2518 = vlaneseq
    %v2519 = vshrl.u32 %v2518, 7
    %v2520 = vsub.s32 %v2517, %v2519
    %v2521 = vrot.slane %v2507, %v2520
    %v2522 = vcombine.low %v2514, %v2521
    %2527 = vst [vmem:[#allocation2] sm:$0xff] %v2471
    %2528 = vst [vmem:[#allocation2 + $0x8] sm:$0xff] %v2488
    %2529 = vst [vmem:[#allocation2 + $0x10] sm:$0xff] %v2505
    %2530 = vst [vmem:[#allocation2 + $0x18] sm:$0xff] %v2522
    // Predicated region
    $region42: #{tpu_custom_call.1} parent=1 // pred_check
      _
    $region43: #{tpu_custom_call.1} parent=1 // pred_check_branch
      %2532 = sbr.rel (0) target = $region45
    $region44: #{tpu_custom_call.1} parent=1 // pred_region
      %s2534 = ssub.s32 512, 512
      %2535 = vsyncadd [#allocation3], %s2534
      %s2537 = sshll.u32 [#allocation2], 4
      %s2538 = int_to_ptr.vmem [resolvable:$true] %s2537
      %2540 = dma.vmem_to_hbm [thread:$0]  %s2538, 512, %s10, [#allocation3]
    $region45: #{tpu_custom_call.1} parent=1 // pred_fallthru
      _
    // Predicated region
    $region46: #{tpu_custom_call.1} parent=1 // pred_check
      _
    $region47: #{tpu_custom_call.1} parent=1 // pred_check_branch
      %2542 = sbr.rel (0) target = $region49
    $region48: #{tpu_custom_call.1} parent=1 // pred_region
      %2543 = dma.done [#allocation3], 512
    $region49: #{tpu_custom_call.1} parent=1 // pred_fallthru
      _
    %2544 = vsyncpa [#allocation3], 1

</llo_original>
